<compile_context>
chip_gen: v6e
topology: v6e:2x2x1
jax: 0.10.0
libtpu: 0.0.40
codegen_flags: <defaults>
</compile_context>

<pallas_src>
import functools

import jax
import jax.numpy as jnp
from jax.experimental import pallas as pl
from jax.experimental.pallas import tpu as pltpu


def _rnn_step_kernel(x_ref, hs_ref, w_ref, b_ref, w_ho_ref, b_ho_ref,
                     out_ref, hs_out_ref):
    """Grid = (batch_tiles,).  Blocks:

    x_ref:      (bt, H)       timestep input for this batch tile
    hs_ref:     (bt, n, H)    previous hidden states, all layers
    w_ref:      (n, 2H, H)    fused [W_ih^T ; W_hh^T] per layer (bf16)
    b_ref:      (n, 1, H)     pre-summed bias b_ih + b_hh (f32)
    w_ho_ref:   (H, H)        output projection weight, transposed (bf16)
    b_ho_ref:   (1, H)        output projection bias (f32)
    out_ref:    (bt, H)       top-layer output
    hs_out_ref: (bt, n, H)    new hidden states, all layers
    """
    n = hs_ref.shape[1]
    H = x_ref.shape[-1]
    cdt = w_ref.dtype                       # bf16 compute dtype for MXU operands

    cur = x_ref[...].astype(cdt)            # running layer input, lives in vregs
    hs_new = []
    for i in range(n):                      # unrolled at trace time (n is static)
        h_prev = hs_ref[:, i, :].astype(cdt)
        pre = (jnp.dot(cur, w_ref[i, pl.ds(0, H), :],
                       preferred_element_type=jnp.float32)
               + jnp.dot(h_prev, w_ref[i, pl.ds(H, H), :],
                         preferred_element_type=jnp.float32)
               + b_ref[i])                  # (bt, H) f32
        h_new = jnp.tanh(pre)
        hs_new.append(h_new)
        cur = h_new.astype(cdt)             # feed next layer (no VMEM round trip)

    # Single dense (bt, n, H) store instead of n masked sublane stores.
    hs_out_ref[...] = jnp.stack(hs_new, axis=1).astype(hs_out_ref.dtype)

    # Output head on the top layer: out = tanh(h_top @ W_ho^T + b_ho).
    o = (jnp.dot(cur, w_ho_ref[...], preferred_element_type=jnp.float32)
         + b_ho_ref[...])
    out_ref[...] = jnp.tanh(o).astype(out_ref.dtype)


def prepare_params(w_ih_t, b_ih, w_hh_t, b_hh, w_ho_t, b_ho,
                   weight_dtype=jnp.bfloat16):
    """Fold per-layer params into the fused kernel layout (parameter-time work).

    w_ih_t, w_hh_t: (n, H, H) already transposed so the kernel computes x @ W.
    b_ih, b_hh:     (n, 1, H);  w_ho_t: (H, H) transposed;  b_ho: (1, H).
    """
    w_xh = jnp.concatenate([w_ih_t, w_hh_t], axis=1).astype(weight_dtype)  # (n,2H,H)
    b_comb = (b_ih + b_hh).astype(jnp.float32)                             # (n,1,H)
    return w_xh, b_comb, w_ho_t.astype(weight_dtype), b_ho.astype(jnp.float32)


def _vmem_capacity_bytes():
    try:
        return int(pltpu.get_tpu_info().vmem_capacity_bytes)
    except Exception:
        return 64 * 1024 * 1024              # conservative v7x-safe fallback


@functools.partial(jax.jit, static_argnames=("batch_tile",))
def rnn_forward(x, hs, w_xh, b_comb, w_ho_t, b_ho, *, batch_tile=None):
    """x: [b, H], hs: [b, n, H] (PyTorch convention). Returns (out, hs_t)."""
    b, n, H = hs.shape
    assert x.shape == (b, H)
    assert w_xh.shape == (n, 2 * H, H)

    if batch_tile is not None:
        bt = batch_tile
    else:
        bt = min(b, 512)
        # Use >=2 batch tiles so the "parallel" axis can engage v7x's second
        # TensorCore.  The weight block index is constant across tiles, so no
        # extra weight DMA within a core; the extra grid step costs ~0.35us on
        # single-TC chips.
        if b > 8 and pl.cdiv(b, bt) < 2:
            bt = max(8, ((pl.cdiv(b, 2) + 7) // 8) * 8)
    n_bt = pl.cdiv(b, bt)

    wsz = jnp.dtype(w_xh.dtype).itemsize
    asz = jnp.dtype(x.dtype).itemsize
    est = 2 * (n * 2 * H * H * wsz            # fused weight stack
               + n * H * 4                    # fused biases
               + 2 * bt * n * H * asz         # hs in + hs_t out blocks
               + 2 * bt * H * asz             # x block + out block
               + H * H * wsz + H * 4)         # output head
    vmem_cap = _vmem_capacity_bytes()
    vmem_limit = int(min(int(vmem_cap * 0.85),
                         max(4 * 1024 * 1024, 2 * est)))

    out, hs_t = pl.pallas_call(
        _rnn_step_kernel,
        out_shape=(
            jax.ShapeDtypeStruct((b, H), x.dtype),
            jax.ShapeDtypeStruct((b, n, H), hs.dtype),
        ),
        grid_spec=pltpu.PrefetchScalarGridSpec(
            num_scalar_prefetch=0,
            grid=(n_bt,),
            in_specs=[
                pl.BlockSpec((bt, H), lambda bi: (bi, 0)),            # x
                pl.BlockSpec((bt, n, H), lambda bi: (bi, 0, 0)),      # hs
                pl.BlockSpec((n, 2 * H, H), lambda bi: (0, 0, 0)),    # fused W
                pl.BlockSpec((n, 1, H), lambda bi: (0, 0, 0)),        # fused b
                pl.BlockSpec((H, H), lambda bi: (0, 0)),              # W_ho
                pl.BlockSpec((1, H), lambda bi: (0, 0)),              # b_ho
            ],
            out_specs=(
                pl.BlockSpec((bt, H), lambda bi: (bi, 0)),            # out
                pl.BlockSpec((bt, n, H), lambda bi: (bi, 0, 0)),      # hs_t
            ),
        ),
        compiler_params=pltpu.CompilerParams(
            dimension_semantics=("parallel",),
            vmem_limit_bytes=vmem_limit),
    )(x, hs, w_xh, b_comb, w_ho_t, b_ho)

    return out, hs_t


def _reference_forward(x, hs, w_xh, b_comb, w_ho_t, b_ho):
    """Pure-JAX reference mirroring the fused-param forward (same dtypes)."""
    n = hs.shape[1]
    H = x.shape[-1]
    cur = x.astype(w_xh.dtype)
    hs_outs = []
    for i in range(n):
        h_prev = hs[:, i, :].astype(w_xh.dtype)
        pre = (jnp.dot(cur, w_xh[i, :H, :], preferred_element_type=jnp.float32)
               + jnp.dot(h_prev, w_xh[i, H:, :], preferred_element_type=jnp.float32)
               + b_comb[i])
        h = jnp.tanh(pre)
        hs_outs.append(h)
        cur = h.astype(w_xh.dtype)
    o = jnp.dot(cur, w_ho_t, preferred_element_type=jnp.float32) + b_ho
    return (jnp.tanh(o).astype(x.dtype),
            jnp.stack(hs_outs, axis=1).astype(hs.dtype))


if __name__ == "__main__":
    # Lane/sublane-aligned small shapes: H multiple of 128, batch multiple of 8.
    batch, n_layers, hidden = 16, 3, 128
    dtype = jnp.float32

    key = jax.random.PRNGKey(0)
    ks = jax.random.split(key, 8)
    bound = float(hidden) ** -0.5   # mimic nn.Linear / RNNCell uniform init

    def u(k, shape):
        return jax.random.uniform(k, shape, dtype, minval=-bound, maxval=bound)

    # Parameters in "already transposed" form (kernel computes x @ W).
    w_ih_t = u(ks[0], (n_layers, hidden, hidden))
    b_ih = u(ks[1], (n_layers, 1, hidden))
    w_hh_t = u(ks[2], (n_layers, hidden, hidden))
    b_hh = u(ks[3], (n_layers, 1, hidden))
    w_ho_t = u(ks[4], (hidden, hidden))
    b_ho = u(ks[5], (1, hidden))

    # Inputs.
    x = jax.random.normal(ks[6], (batch, hidden), dtype)
    hs = jax.random.normal(ks[7], (batch, n_layers, hidden), dtype)

    params = prepare_params(w_ih_t, b_ih, w_hh_t, b_hh, w_ho_t, b_ho)

    out, hs_t = rnn_forward(x, hs, *params)
    out = jax.block_until_ready(out)
    hs_t = jax.block_until_ready(hs_t)

    assert out.shape == (batch, hidden)
    assert hs_t.shape == (batch, n_layers, hidden)

    # Correctness vs. a pure-JAX reference using the same (bf16) fused params.
    # 2e-3 tolerance is a deliberate consequence of bf16 weights/activations.
    ref_out, ref_hs = _reference_forward(x, hs, *params)
    assert jnp.allclose(out, ref_out, atol=2e-3, rtol=2e-3), (
        float(jnp.max(jnp.abs(out - ref_out))))
    assert jnp.allclose(hs_t, ref_hs, atol=2e-3, rtol=2e-3), (
        float(jnp.max(jnp.abs(hs_t - ref_hs))))

    print("KERNEL_OK")
</pallas_src>

<mosaic_0001>
module attributes {stable_mosaic.version = 11 : i64} {
  func.func @_rnn_step_kernel(%arg0: i32, %arg1: memref<8x128xf32, #tpu.memory_space<vmem>>, %arg2: memref<8x3x128xf32, #tpu.memory_space<vmem>>, %arg3: memref<3x256x128xbf16, #tpu.memory_space<vmem>>, %arg4: memref<3x1x128xf32, #tpu.memory_space<vmem>>, %arg5: memref<128x128xbf16, #tpu.memory_space<vmem>>, %arg6: memref<1x128xf32, #tpu.memory_space<vmem>>, %arg7: memref<8x128xf32, #tpu.memory_space<vmem>>, %arg8: memref<8x3x128xf32, #tpu.memory_space<vmem>>) attributes {dimension_semantics = [#tpu.dimension_semantics<parallel>], iteration_bounds = array<i64: 2>, scalar_prefetch = 0 : i64, scratch_operands = 0 : i64, tpu.core_type = #tpu.core_type<tc>, window_params = [{transform_indices = @transform_0, window_bounds = array<i64: 8, 128>}, {transform_indices = @transform_1, window_bounds = array<i64: 8, 3, 128>}, {pipeline_mode = #tpu.pipeline_mode<synchronous>, transform_indices = @transform_2, window_bounds = array<i64: 3, 256, 128>}, {pipeline_mode = #tpu.pipeline_mode<synchronous>, transform_indices = @transform_3, window_bounds = array<i64: 3, 1, 128>}, {pipeline_mode = #tpu.pipeline_mode<synchronous>, transform_indices = @transform_4, window_bounds = array<i64: 128, 128>}, {pipeline_mode = #tpu.pipeline_mode<synchronous>, transform_indices = @transform_5, window_bounds = array<i64: 1, 128>}, {transform_indices = @transform_6, window_bounds = array<i64: 8, 128>}, {transform_indices = @transform_7, window_bounds = array<i64: 8, 3, 128>}]} {
    %c0 = arith.constant 0 : index
    %c0_0 = arith.constant 0 : index
    %0 = vector.load %arg1[%c0, %c0_0] : memref<8x128xf32, #tpu.memory_space<vmem>>, vector<8x128xf32>
    %1 = arith.truncf %0 : vector<8x128xf32> to vector<8x128xbf16>
    %c0_1 = arith.constant 0 : index
    %c0_2 = arith.constant 0 : index
    %c0_3 = arith.constant 0 : index
    %2 = vector.load %arg2[%c0_1, %c0_2, %c0_3] : memref<8x3x128xf32, #tpu.memory_space<vmem>>, vector<8x1x128xf32>
    %3 = vector.shape_cast %2 : vector<8x1x128xf32> to vector<8x128xf32>
    %4 = arith.truncf %3 : vector<8x128xf32> to vector<8x128xbf16>
    %c0_4 = arith.constant 0 : index
    %c0_5 = arith.constant 0 : index
    %c0_6 = arith.constant 0 : index
    %5 = vector.load %arg3[%c0_4, %c0_5, %c0_6] : memref<3x256x128xbf16, #tpu.memory_space<vmem>>, vector<1x128x128xbf16>
    %6 = vector.shape_cast %5 : vector<1x128x128xbf16> to vector<128x128xbf16>
    %cst = arith.constant dense<0.000000e+00> : vector<8x128xf32>
    %7 = tpu.matmul %1, %6, %cst {dimension_numbers = #tpu.dot_dimension_numbers<[1], [0], [0], [1], [0, 0, 1, 1], [], []>} : vector<8x128xbf16>, vector<128x128xbf16>, vector<8x128xf32> -> vector<8x128xf32>
    %c0_7 = arith.constant 0 : index
    %c128 = arith.constant 128 : index
    %c0_8 = arith.constant 0 : index
    %8 = vector.load %arg3[%c0_7, %c128, %c0_8] : memref<3x256x128xbf16, #tpu.memory_space<vmem>>, vector<1x128x128xbf16>
    %9 = vector.shape_cast %8 : vector<1x128x128xbf16> to vector<128x128xbf16>
    %cst_9 = arith.constant dense<0.000000e+00> : vector<8x128xf32>
    %10 = tpu.matmul %4, %9, %cst_9 {dimension_numbers = #tpu.dot_dimension_numbers<[1], [0], [0], [1], [0, 0, 1, 1], [], []>} : vector<8x128xbf16>, vector<128x128xbf16>, vector<8x128xf32> -> vector<8x128xf32>
    %11 = arith.addf %7, %10 : vector<8x128xf32>
    %c0_10 = arith.constant 0 : index
    %c0_11 = arith.constant 0 : index
    %c0_12 = arith.constant 0 : index
    %12 = vector.load %arg4[%c0_10, %c0_11, %c0_12] : memref<3x1x128xf32, #tpu.memory_space<vmem>>, vector<1x1x128xf32>
    %13 = vector.shape_cast %12 : vector<1x1x128xf32> to vector<1x128xf32>
    %14 = vector.broadcast %13 : vector<1x128xf32> to vector<8x128xf32>
    %15 = arith.addf %11, %14 : vector<8x128xf32>
    %16 = math.tanh %15 : vector<8x128xf32>
    %17 = arith.truncf %16 : vector<8x128xf32> to vector<8x128xbf16>
    %c0_13 = arith.constant 0 : index
    %c1 = arith.constant 1 : index
    %c0_14 = arith.constant 0 : index
    %18 = vector.load %arg2[%c0_13, %c1, %c0_14] : memref<8x3x128xf32, #tpu.memory_space<vmem>>, vector<8x1x128xf32>
    %19 = vector.shape_cast %18 : vector<8x1x128xf32> to vector<8x128xf32>
    %20 = arith.truncf %19 : vector<8x128xf32> to vector<8x128xbf16>
    %c1_15 = arith.constant 1 : index
    %c0_16 = arith.constant 0 : index
    %c0_17 = arith.constant 0 : index
    %21 = vector.load %arg3[%c1_15, %c0_16, %c0_17] : memref<3x256x128xbf16, #tpu.memory_space<vmem>>, vector<1x128x128xbf16>
    %22 = vector.shape_cast %21 : vector<1x128x128xbf16> to vector<128x128xbf16>
    %cst_18 = arith.constant dense<0.000000e+00> : vector<8x128xf32>
    %23 = tpu.matmul %17, %22, %cst_18 {dimension_numbers = #tpu.dot_dimension_numbers<[1], [0], [0], [1], [0, 0, 1, 1], [], []>} : vector<8x128xbf16>, vector<128x128xbf16>, vector<8x128xf32> -> vector<8x128xf32>
    %c1_19 = arith.constant 1 : index
    %c128_20 = arith.constant 128 : index
    %c0_21 = arith.constant 0 : index
    %24 = vector.load %arg3[%c1_19, %c128_20, %c0_21] : memref<3x256x128xbf16, #tpu.memory_space<vmem>>, vector<1x128x128xbf16>
    %25 = vector.shape_cast %24 : vector<1x128x128xbf16> to vector<128x128xbf16>
    %cst_22 = arith.constant dense<0.000000e+00> : vector<8x128xf32>
    %26 = tpu.matmul %20, %25, %cst_22 {dimension_numbers = #tpu.dot_dimension_numbers<[1], [0], [0], [1], [0, 0, 1, 1], [], []>} : vector<8x128xbf16>, vector<128x128xbf16>, vector<8x128xf32> -> vector<8x128xf32>
    %27 = arith.addf %23, %26 : vector<8x128xf32>
    %c1_23 = arith.constant 1 : index
    %c0_24 = arith.constant 0 : index
    %c0_25 = arith.constant 0 : index
    %28 = vector.load %arg4[%c1_23, %c0_24, %c0_25] : memref<3x1x128xf32, #tpu.memory_space<vmem>>, vector<1x1x128xf32>
    %29 = vector.shape_cast %28 : vector<1x1x128xf32> to vector<1x128xf32>
    %30 = vector.broadcast %29 : vector<1x128xf32> to vector<8x128xf32>
    %31 = arith.addf %27, %30 : vector<8x128xf32>
    %32 = math.tanh %31 : vector<8x128xf32>
    %33 = arith.truncf %32 : vector<8x128xf32> to vector<8x128xbf16>
    %c0_26 = arith.constant 0 : index
    %c2 = arith.constant 2 : index
    %c0_27 = arith.constant 0 : index
    %34 = vector.load %arg2[%c0_26, %c2, %c0_27] : memref<8x3x128xf32, #tpu.memory_space<vmem>>, vector<8x1x128xf32>
    %35 = vector.shape_cast %34 : vector<8x1x128xf32> to vector<8x128xf32>
    %36 = arith.truncf %35 : vector<8x128xf32> to vector<8x128xbf16>
    %c2_28 = arith.constant 2 : index
    %c0_29 = arith.constant 0 : index
    %c0_30 = arith.constant 0 : index
    %37 = vector.load %arg3[%c2_28, %c0_29, %c0_30] : memref<3x256x128xbf16, #tpu.memory_space<vmem>>, vector<1x128x128xbf16>
    %38 = vector.shape_cast %37 : vector<1x128x128xbf16> to vector<128x128xbf16>
    %cst_31 = arith.constant dense<0.000000e+00> : vector<8x128xf32>
    %39 = tpu.matmul %33, %38, %cst_31 {dimension_numbers = #tpu.dot_dimension_numbers<[1], [0], [0], [1], [0, 0, 1, 1], [], []>} : vector<8x128xbf16>, vector<128x128xbf16>, vector<8x128xf32> -> vector<8x128xf32>
    %c2_32 = arith.constant 2 : index
    %c128_33 = arith.constant 128 : index
    %c0_34 = arith.constant 0 : index
    %40 = vector.load %arg3[%c2_32, %c128_33, %c0_34] : memref<3x256x128xbf16, #tpu.memory_space<vmem>>, vector<1x128x128xbf16>
    %41 = vector.shape_cast %40 : vector<1x128x128xbf16> to vector<128x128xbf16>
    %cst_35 = arith.constant dense<0.000000e+00> : vector<8x128xf32>
    %42 = tpu.matmul %36, %41, %cst_35 {dimension_numbers = #tpu.dot_dimension_numbers<[1], [0], [0], [1], [0, 0, 1, 1], [], []>} : vector<8x128xbf16>, vector<128x128xbf16>, vector<8x128xf32> -> vector<8x128xf32>
    %43 = arith.addf %39, %42 : vector<8x128xf32>
    %c2_36 = arith.constant 2 : index
    %c0_37 = arith.constant 0 : index
    %c0_38 = arith.constant 0 : index
    %44 = vector.load %arg4[%c2_36, %c0_37, %c0_38] : memref<3x1x128xf32, #tpu.memory_space<vmem>>, vector<1x1x128xf32>
    %45 = vector.shape_cast %44 : vector<1x1x128xf32> to vector<1x128xf32>
    %46 = vector.broadcast %45 : vector<1x128xf32> to vector<8x128xf32>
    %47 = arith.addf %43, %46 : vector<8x128xf32>
    %48 = math.tanh %47 : vector<8x128xf32>
    %49 = arith.truncf %48 : vector<8x128xf32> to vector<8x128xbf16>
    %50 = vector.shape_cast %16 : vector<8x128xf32> to vector<8x1x128xf32>
    %51 = vector.shape_cast %32 : vector<8x128xf32> to vector<8x1x128xf32>
    %52 = vector.shape_cast %48 : vector<8x128xf32> to vector<8x1x128xf32>
    %53 = tpu.concatenate %50, %51, %52 in 1 : vector<8x1x128xf32>, vector<8x1x128xf32>, vector<8x1x128xf32> -> vector<8x3x128xf32>
    %c0_39 = arith.constant 0 : index
    %c0_40 = arith.constant 0 : index
    %c0_41 = arith.constant 0 : index
    %54 = vector.load %arg8[%c0_39, %c0_40, %c0_41] : memref<8x3x128xf32, #tpu.memory_space<vmem>>, vector<8x3x128xf32>
    tpu.vector_store %arg8[%c0_39, %c0_40, %c0_41], %53 {strides = array<i32>} : memref<8x3x128xf32, #tpu.memory_space<vmem>>, vector<8x3x128xf32>,
    %c0_42 = arith.constant 0 : index
    %c0_43 = arith.constant 0 : index
    %55 = vector.load %arg5[%c0_42, %c0_43] : memref<128x128xbf16, #tpu.memory_space<vmem>>, vector<128x128xbf16>
    %cst_44 = arith.constant dense<0.000000e+00> : vector<8x128xf32>
    %56 = tpu.matmul %49, %55, %cst_44 {dimension_numbers = #tpu.dot_dimension_numbers<[1], [0], [0], [1], [0, 0, 1, 1], [], []>} : vector<8x128xbf16>, vector<128x128xbf16>, vector<8x128xf32> -> vector<8x128xf32>
    %c0_45 = arith.constant 0 : index
    %c0_46 = arith.constant 0 : index
    %57 = vector.load %arg6[%c0_45, %c0_46] : memref<1x128xf32, #tpu.memory_space<vmem>>, vector<1x128xf32>
    %58 = vector.broadcast %57 : vector<1x128xf32> to vector<8x128xf32>
    %59 = arith.addf %56, %58 : vector<8x128xf32>
    %60 = math.tanh %59 : vector<8x128xf32>
    %c0_47 = arith.constant 0 : index
    %c0_48 = arith.constant 0 : index
    %61 = vector.load %arg7[%c0_47, %c0_48] : memref<8x128xf32, #tpu.memory_space<vmem>>, vector<8x128xf32>
    tpu.vector_store %arg7[%c0_47, %c0_48], %60 {strides = array<i32>} : memref<8x128xf32, #tpu.memory_space<vmem>>, vector<8x128xf32>,
    return
  }
  func.func @transform_0(%arg0: i32) -> (i32, i32) {
    %c0_i32 = arith.constant 0 : i32
    %c0_i32_0 = arith.constant 0 : i32
    return %arg0, %c0_i32 : i32, i32
  }
  func.func @transform_1(%arg0: i32) -> (i32, i32, i32) {
    %c0_i32 = arith.constant 0 : i32
    %c0_i32_0 = arith.constant 0 : i32
    %c0_i32_1 = arith.constant 0 : i32
    return %arg0, %c0_i32, %c0_i32_0 : i32, i32, i32
  }
  func.func @transform_2(%arg0: i32) -> (i32, i32, i32) {
    %c0_i32 = arith.constant 0 : i32
    %c0_i32_0 = arith.constant 0 : i32
    %c0_i32_1 = arith.constant 0 : i32
    %c0_i32_2 = arith.constant 0 : i32
    return %c0_i32, %c0_i32_0, %c0_i32_1 : i32, i32, i32
  }
  func.func @transform_3(%arg0: i32) -> (i32, i32, i32) {
    %c0_i32 = arith.constant 0 : i32
    %c0_i32_0 = arith.constant 0 : i32
    %c0_i32_1 = arith.constant 0 : i32
    %c0_i32_2 = arith.constant 0 : i32
    return %c0_i32, %c0_i32_0, %c0_i32_1 : i32, i32, i32
  }
  func.func @transform_4(%arg0: i32) -> (i32, i32) {
    %c0_i32 = arith.constant 0 : i32
    %c0_i32_0 = arith.constant 0 : i32
    %c0_i32_1 = arith.constant 0 : i32
    return %c0_i32, %c0_i32_0 : i32, i32
  }
  func.func @transform_5(%arg0: i32) -> (i32, i32) {
    %c0_i32 = arith.constant 0 : i32
    %c0_i32_0 = arith.constant 0 : i32
    %c0_i32_1 = arith.constant 0 : i32
    return %c0_i32, %c0_i32_0 : i32, i32
  }
  func.func @transform_6(%arg0: i32) -> (i32, i32) {
    %c0_i32 = arith.constant 0 : i32
    %c0_i32_0 = arith.constant 0 : i32
    return %arg0, %c0_i32 : i32, i32
  }
  func.func @transform_7(%arg0: i32) -> (i32, i32, i32) {
    %c0_i32 = arith.constant 0 : i32
    %c0_i32_0 = arith.constant 0 : i32
    %c0_i32_1 = arith.constant 0 : i32
    return %arg0, %c0_i32, %c0_i32_0 : i32, i32, i32
  }
}

</mosaic_0001>

<llo_original>
// kernel: rnn_forward.1
$region0: #{rnn_forward.1}
  #allocation0 [shape = 'u32[]', space=smem, size = 0x4, offset = 0x4, fixed_abs, tag = 'smem constant byte address 0x4 - core index']
  #allocation1 [shape = 'u32[144,128]{1,0:T(1,128)}', space=vmem, size = 0x12000, scoped, tag = 'internal scratch']
  %s0 = inlined_call_operand.vmem [shape: f32[16,128], index: 0, kind: input, shape index: {}]
  %s1 = inlined_call_operand.vmem [shape: f32[16,3,128], index: 1, kind: input, shape index: {}]
  %s2 = inlined_call_operand.hbm [shape: bf16[3,256,128], index: 2, kind: input, shape index: {}]
  %s3 = inlined_call_operand.vmem [shape: f32[3,1,128], index: 3, kind: input, shape index: {}]
  %s4 = inlined_call_operand.vmem [shape: bf16[128,128], index: 4, kind: input, shape index: {}]
  %s5 = inlined_call_operand.vmem [shape: f32[1,128], index: 5, kind: input, shape index: {}]
  %s6 = inlined_call_operand.hbm [shape: f32[16,128], index: 6, kind: output, shape index: {0}]
  %s7 = inlined_call_operand.vmem [shape: f32[16,3,128], index: 7, kind: output, shape index: {1}]
  %8 = xla_tuple %s6, %s7
  %s9 = sld [smem:[#allocation0]]
  $region69: #{rnn_forward.1} parent=0
    _
  %s11 = ssub.s32 1, %s9
  %s12 = scalar_select 0, %s11, %s9
  $region1: #{rnn_forward.1} parent=0
    #allocation2 [shape = 'u8[196608]{0}', space=vmem, size = 0x30000, scoped, tag = 'input window, operand 2, single buffered']
    #allocation3 [shape = 's32[2]{0}', space=sflag, size = 0x8, scoped, tag = 'scoped memory for rnn_forward.1']
    #allocation4 [shape = 's32[2]{0}', space=sflag, size = 0x8, scoped, tag = 'scoped memory for rnn_forward.1']
    #allocation5 [shape = 'u8[8192]{0}', space=vmem, size = 0x2000, scoped, tag = 'output window, operand 0']
    %13 = vsyncpa [#allocation3], 0
    %14 = vsyncpa [#allocation4], 0
    %s15 = scalar_lea.sflag [#allocation4], 1
    %16 = vsyncpa %s15, 0
    loop: start=0, step=1, limit=4
    $region2: #{rnn_forward.1} parent=1 // loop_pre_header
      _
    $region3: #{rnn_forward.1} parent=1 // loop_header
      %s18 = sphi 0, %s22
      %p19 = scmp.ge.s32.totalorder %s18, 4
      %s28 = sphi 0, %s30
      %s31 = sphi 0, %s28
      %s32 = sphi 0, %s31
      %s48 = sphi 0, %s32
      %s54 = sphi 0, %s56
      %s57 = sphi 0, %s54
      %s58 = sphi 0, %s57
      %s74 = sphi 0, %s58
      %s78 = sphi 0, %s78
      %s80 = sphi 0, %s78
      %s81 = sphi 0, %s80
      %s95 = sphi 0, %s81
      %s99 = sphi 0, %s99
      %s101 = sphi 0, %s99
      %s102 = sphi 0, %s101
      %s116 = sphi 0, %s102
      %s120 = sphi 0, %s120
      %s122 = sphi 0, %s120
      %s123 = sphi 0, %s122
      %s137 = sphi 0, %s123
      %s141 = sphi 0, %s141
      %s143 = sphi 0, %s141
      %s144 = sphi 0, %s143
      %s158 = sphi 0, %s144
      %s164 = sphi 0, %s166
      %s167 = sphi 0, %s164
      %s168 = sphi 0, %s167
      %s184 = sphi 0, %s168
      %s190 = sphi 0, %s192
      %s193 = sphi 0, %s190
      %s194 = sphi 0, %s193
      %s210 = sphi 0, %s194
    $region4: #{rnn_forward.1} parent=1 // loop_header_branch
      %21 = sbr.rel (%p19) target = $region8
    $region5: #{rnn_forward.1} parent=1 // loop_body
      %s23 = ssub.s32 %s18, 1
      %s24 = ssub.s32 %s18, 2
      %s25 = sadd.s32 %s18, 1
      %s26 = ssub.s32 %s18, %s25
      %p27 = scmp.eq.s32.totalorder %s26, 0
      %s29 = sadd.s32 %s28, 1
      %s30 = scalar_select %p27, %s28, %s29
      %p33 = pneg %p27
      %p34 = scmp.eq.s32.totalorder %s18, 1
      %p35 = por %p33, %p34
      %p36 = scmp.ne.s32.totalorder %s28, %s31
      %p37 = scmp.eq.s32.totalorder %s18, 0
      %p38 = por %p36, %p37
      %p39 = scmp.ne.s32.totalorder %s28, %s31
      %p40 = scmp.eq.s32.totalorder %s23, 1
      %p41 = por %p39, %p40
      %p42 = scmp.ne.s32.totalorder %s31, %s32
      %p43 = scmp.eq.s32.totalorder %s23, 0
      %p44 = por %p42, %p43
      %p45 = scmp.ne.s32.totalorder %s31, %s32
      %p46 = scmp.eq.s32.totalorder %s24, 1
      %p47 = por %p45, %p46
      %p49 = scmp.ne.s32.totalorder %s32, %s48
      %p50 = scmp.eq.s32.totalorder %s24, 0
      %p51 = por %p49, %p50
      %s52 = ssub.s32 %s18, %s25
      %p53 = scmp.eq.s32.totalorder %s52, 0
      %s55 = sadd.s32 %s54, 1
      %s56 = scalar_select %p53, %s54, %s55
      %p59 = pneg %p53
      %p60 = scmp.eq.s32.totalorder %s18, 1
      %p61 = por %p59, %p60
      %p62 = scmp.ne.s32.totalorder %s54, %s57
      %p63 = scmp.eq.s32.totalorder %s18, 0
      %p64 = por %p62, %p63
      %p65 = scmp.ne.s32.totalorder %s54, %s57
      %p66 = scmp.eq.s32.totalorder %s23, 1
      %p67 = por %p65, %p66
      %p68 = scmp.ne.s32.totalorder %s57, %s58
      %p69 = scmp.eq.s32.totalorder %s23, 0
      %p70 = por %p68, %p69
      %p71 = scmp.ne.s32.totalorder %s57, %s58
      %p72 = scmp.eq.s32.totalorder %s24, 1
      %p73 = por %p71, %p72
      %p75 = scmp.ne.s32.totalorder %s58, %s74
      %p76 = scmp.eq.s32.totalorder %s24, 0
      %p77 = por %p75, %p76
      %s79 = sadd.s32 %s78, 1
      %p82 = scmp.eq.s32.totalorder %s18, 1
      %p83 = scmp.ne.s32.totalorder %s78, %s80
      %p84 = scmp.eq.s32.totalorder %s18, 0
      %p85 = por %p83, %p84
      %p86 = scmp.ne.s32.totalorder %s78, %s80
      %p87 = scmp.eq.s32.totalorder %s23, 1
      %p88 = por %p86, %p87
      %p89 = scmp.ne.s32.totalorder %s80, %s81
      %p90 = scmp.eq.s32.totalorder %s23, 0
      %p91 = por %p89, %p90
      %p92 = scmp.ne.s32.totalorder %s80, %s81
      %p93 = scmp.eq.s32.totalorder %s24, 1
      %p94 = por %p92, %p93
      %p96 = scmp.ne.s32.totalorder %s81, %s95
      %p97 = scmp.eq.s32.totalorder %s24, 0
      %p98 = por %p96, %p97
      %s100 = sadd.s32 %s99, 1
      %p103 = scmp.eq.s32.totalorder %s18, 1
      %p104 = scmp.ne.s32.totalorder %s99, %s101
      %p105 = scmp.eq.s32.totalorder %s18, 0
      %p106 = por %p104, %p105
      %p107 = scmp.ne.s32.totalorder %s99, %s101
      %p108 = scmp.eq.s32.totalorder %s23, 1
      %p109 = por %p107, %p108
      %p110 = scmp.ne.s32.totalorder %s101, %s102
      %p111 = scmp.eq.s32.totalorder %s23, 0
      %p112 = por %p110, %p111
      %p113 = scmp.ne.s32.totalorder %s101, %s102
      %p114 = scmp.eq.s32.totalorder %s24, 1
      %p115 = por %p113, %p114
      %p117 = scmp.ne.s32.totalorder %s102, %s116
      %p118 = scmp.eq.s32.totalorder %s24, 0
      %p119 = por %p117, %p118
      %s121 = sadd.s32 %s120, 1
      %p124 = scmp.eq.s32.totalorder %s18, 1
      %p125 = scmp.ne.s32.totalorder %s120, %s122
      %p126 = scmp.eq.s32.totalorder %s18, 0
      %p127 = por %p125, %p126
      %p128 = scmp.ne.s32.totalorder %s120, %s122
      %p129 = scmp.eq.s32.totalorder %s23, 1
      %p130 = por %p128, %p129
      %p131 = scmp.ne.s32.totalorder %s122, %s123
      %p132 = scmp.eq.s32.totalorder %s23, 0
      %p133 = por %p131, %p132
      %p134 = scmp.ne.s32.totalorder %s122, %s123
      %p135 = scmp.eq.s32.totalorder %s24, 1
      %p136 = por %p134, %p135
      %p138 = scmp.ne.s32.totalorder %s123, %s137
      %p139 = scmp.eq.s32.totalorder %s24, 0
      %p140 = por %p138, %p139
      %s142 = sadd.s32 %s141, 1
      %p145 = scmp.eq.s32.totalorder %s18, 1
      %p146 = scmp.ne.s32.totalorder %s141, %s143
      %p147 = scmp.eq.s32.totalorder %s18, 0
      %p148 = por %p146, %p147
      %p149 = scmp.ne.s32.totalorder %s141, %s143
      %p150 = scmp.eq.s32.totalorder %s23, 1
      %p151 = por %p149, %p150
      %p152 = scmp.ne.s32.totalorder %s143, %s144
      %p153 = scmp.eq.s32.totalorder %s23, 0
      %p154 = por %p152, %p153
      %p155 = scmp.ne.s32.totalorder %s143, %s144
      %p156 = scmp.eq.s32.totalorder %s24, 1
      %p157 = por %p155, %p156
      %p159 = scmp.ne.s32.totalorder %s144, %s158
      %p160 = scmp.eq.s32.totalorder %s24, 0
      %p161 = por %p159, %p160
      %s162 = ssub.s32 %s18, %s25
      %p163 = scmp.eq.s32.totalorder %s162, 0
      %s165 = sadd.s32 %s164, 1
      %s166 = scalar_select %p163, %s164, %s165
      %p169 = pneg %p163
      %p170 = scmp.eq.s32.totalorder %s18, 1
      %p171 = por %p169, %p170
      %p172 = scmp.ne.s32.totalorder %s164, %s167
      %p173 = scmp.eq.s32.totalorder %s18, 0
      %p174 = por %p172, %p173
      %p175 = scmp.ne.s32.totalorder %s164, %s167
      %p176 = scmp.eq.s32.totalorder %s23, 1
      %p177 = por %p175, %p176
      %p178 = scmp.ne.s32.totalorder %s167, %s168
      %p179 = scmp.eq.s32.totalorder %s23, 0
      %p180 = por %p178, %p179
      %p181 = scmp.ne.s32.totalorder %s167, %s168
      %p182 = scmp.eq.s32.totalorder %s24, 1
      %p183 = por %p181, %p182
      %p185 = scmp.ne.s32.totalorder %s168, %s184
      %p186 = scmp.eq.s32.totalorder %s24, 0
      %p187 = por %p185, %p186
      %s188 = ssub.s32 %s18, %s25
      %p189 = scmp.eq.s32.totalorder %s188, 0
      %s191 = sadd.s32 %s190, 1
      %s192 = scalar_select %p189, %s190, %s191
      %p195 = pneg %p189
      %p196 = scmp.eq.s32.totalorder %s18, 1
      %p197 = por %p195, %p196
      %p198 = scmp.ne.s32.totalorder %s190, %s193
      %p199 = scmp.eq.s32.totalorder %s18, 0
      %p200 = por %p198, %p199
      %p201 = scmp.ne.s32.totalorder %s190, %s193
      %p202 = scmp.eq.s32.totalorder %s23, 1
      %p203 = por %p201, %p202
      %p204 = scmp.ne.s32.totalorder %s193, %s194
      %p205 = scmp.eq.s32.totalorder %s23, 0
      %p206 = por %p204, %p205
      %p207 = scmp.ne.s32.totalorder %s193, %s194
      %p208 = scmp.eq.s32.totalorder %s24, 1
      %p209 = por %p207, %p208
      %p211 = scmp.ne.s32.totalorder %s194, %s210
      %p212 = scmp.eq.s32.totalorder %s24, 0
      %p213 = por %p211, %p212
      %p214 = scmp.le.s32.totalorder 1, %s18
      %p215 = scmp.lt.s32.totalorder %s18, 3
      %p216 = pnand %p214, %p215
      %p217 = pneg %p216
      // Predicated region
      $region9: #{rnn_forward.1} parent=5 // pred_check
        _
      $region10: #{rnn_forward.1} parent=5 // pred_check_branch
        %219 = sbr.rel (%p216) target = $region12
      $region11: #{rnn_forward.1} parent=5 // pred_region
        %s220 = ssub.s32 %s18, 1
        // Predicated region
        $region13: #{rnn_forward.1} parent=11 // pred_check
          %p221 = pneg %p91
        $region14: #{rnn_forward.1} parent=11 // pred_check_branch
          %223 = sbr.rel (%p221) target = $region16
        $region15: #{rnn_forward.1} parent=11 // pred_region
          %s225 = ssub.s32 6144, 6144
          %226 = vsyncadd [#allocation3], %s225
          %s227 = sshll.u32 [#allocation2], 4
          %s228 = int_to_ptr.vmem [resolvable:$true] %s227
          %233 = dma.hbm_to_vmem [thread:$0]  %s2, 6144, %s228, [#allocation3], 64, 64, 4
        $region16: #{rnn_forward.1} parent=11 // pred_fallthru
          _
        // Predicated region
        $region17: #{rnn_forward.1} parent=11 // pred_check
          %p234 = pneg %p112
        $region18: #{rnn_forward.1} parent=11 // pred_check_branch
          %236 = sbr.rel (%p234) target = $region20
        $region19: #{rnn_forward.1} parent=11 // pred_region
          _
        $region20: #{rnn_forward.1} parent=11 // pred_fallthru
          _
        // Predicated region
        $region21: #{rnn_forward.1} parent=11 // pred_check
          %p237 = pneg %p133
        $region22: #{rnn_forward.1} parent=11 // pred_check_branch
          %239 = sbr.rel (%p237) target = $region24
        $region23: #{rnn_forward.1} parent=11 // pred_region
          _
        $region24: #{rnn_forward.1} parent=11 // pred_fallthru
          _
        // Predicated region
        $region25: #{rnn_forward.1} parent=11 // pred_check
          %p240 = pneg %p154
        $region26: #{rnn_forward.1} parent=11 // pred_check_branch
          %242 = sbr.rel (%p240) target = $region28
        $region27: #{rnn_forward.1} parent=11 // pred_region
          _
        $region28: #{rnn_forward.1} parent=11 // pred_fallthru
          _
      $region12: #{rnn_forward.1} parent=5 // pred_fallthru
        _
      %p243 = scmp.lt.s32.totalorder %s18, 2
      // Predicated region
      $region29: #{rnn_forward.1} parent=5 // pred_check
        %p244 = pneg %p243
      $region30: #{rnn_forward.1} parent=5 // pred_check_branch
        %246 = sbr.rel (%p244) target = $region32
      $region31: #{rnn_forward.1} parent=5 // pred_region
        // Predicated region
        $region33: #{rnn_forward.1} parent=31 // pred_check
          %p247 = pneg %p38
        $region34: #{rnn_forward.1} parent=31 // pred_check_branch
          %249 = sbr.rel (%p247) target = $region36
        $region35: #{rnn_forward.1} parent=31 // pred_region
          %p250 = scmp.lt.s32.totalorder %s18, 1
          %s251 = scalar_select %p250, %s18, 1
          %s252 = smul.addr %s251, 8
          %s253 = scalar_lea.vmem %s0, %s252
        $region36: #{rnn_forward.1} parent=31 // pred_fallthru
          _
        // Predicated region
        $region37: #{rnn_forward.1} parent=31 // pred_check
          %p254 = pneg %p64
        $region38: #{rnn_forward.1} parent=31 // pred_check_branch
          %256 = sbr.rel (%p254) target = $region40
        $region39: #{rnn_forward.1} parent=31 // pred_region
          %s257 = smul.u32 8, %s18
          %p258 = scmp.lt.s32.totalorder %s257, 15
          %s259 = scalar_select %p258, %s257, 15
          %s260 = smul.addr %s259, 4
          %s261 = scalar_lea.vmem %s1, %s260
          %s262 = smul.u32 8, %s18
        $region40: #{rnn_forward.1} parent=31 // pred_fallthru
          _
      $region32: #{rnn_forward.1} parent=5 // pred_fallthru
        _
      %p263 = scmp.le.s32.totalorder 1, %s18
      %p264 = scmp.lt.s32.totalorder %s18, 3
      %p265 = pnand %p263, %p264
      %p266 = pneg %p265
      // Predicated region
      $region41: #{rnn_forward.1} parent=5 // pred_check
        _
      $region42: #{rnn_forward.1} parent=5 // pred_check_branch
        %268 = sbr.rel (%p265) target = $region44
      $region43: #{rnn_forward.1} parent=5 // pred_region
        %s269 = ssub.s32 %s18, 1
        // Predicated region
        $region45: #{rnn_forward.1} parent=43 // pred_check
          %p270 = pneg %p91
        $region46: #{rnn_forward.1} parent=43 // pred_check_branch
          %272 = sbr.rel (%p270) target = $region48
        $region47: #{rnn_forward.1} parent=43 // pred_region
          %273 = dma.done [#allocation3], 6144
        $region48: #{rnn_forward.1} parent=43 // pred_fallthru
          _
        %p274 = scmp.lt.s32.totalorder %s23, 1
        %s275 = scalar_select %p274, %s23, 1
        %s276 = smul.addr %s275, 8
        %s277 = scalar_lea.vmem %s0, %s276
        %p278 = pneg %p44
        %p279 = pneg %p41
        %s280 = smul.u32 8, %s23
        %p281 = scmp.lt.s32.totalorder %s280, 15
        %s282 = scalar_select %p281, %s280, 15
        %s283 = smul.addr %s282, 4
        %s284 = scalar_lea.vmem %s1, %s283
        %p285 = pneg %p70
        %p286 = pneg %p67
        %p287 = pneg %p91
        %p288 = pneg %p88
        %p289 = pneg %p112
        %p290 = pneg %p109
        %p291 = pneg %p133
        %p292 = pneg %p130
        %p293 = pneg %p154
        %p294 = pneg %p151
        %p295 = pneg %p180
        %p296 = pneg %p177
        %s297 = sand.u32 %s167, 1
        %s298 = scalar_lea.sflag [#allocation4], %s297
        %s299 = sand.u32 %s167, 1
        %s300 = smul.addr %s299, 8
        %s301 = scalar_lea.vmem [#allocation5], %s300
        %p302 = pneg %p206
        %p303 = pneg %p203
        %s304 = smul.u32 8, %s23
        %p305 = scmp.lt.s32.totalorder %s304, 15
        %s306 = scalar_select %p305, %s304, 15
        %s307 = smul.addr %s306, 4
        %s308 = scalar_lea.vmem %s7, %s307
        %p309 = scmp.lt.s32.totalorder %s23, 1
        %s310 = scalar_select %p309, %s23, 1
        %s311 = smul.addr %s310, 8
        %s312 = scalar_lea.vmem %s0, %s311
        %s313 = smul.u32 8, %s23
        %p314 = scmp.lt.s32.totalorder %s313, 15
        %s315 = scalar_select %p314, %s313, 15
        %s316 = smul.addr %s315, 4
        %s317 = scalar_lea.vmem %s1, %s316
        %s318 = smul.u32 8, %s23
        %s319 = smul.u32 8, %s23
        %p320 = scmp.lt.s32.totalorder %s319, 15
        %s321 = scalar_select %p320, %s319, 15
        %s322 = smul.addr %s321, 4
        %s323 = scalar_lea.vmem %s7, %s322
        %s324 = smul.u32 8, %s23
        %v326 = vld [vmem:[%s312] sm:$0xff]
        %v327 = vpack.c.bf16 %v326, %v326
        %v328 = vld [vmem:[%s317] sm:$0x1]
        %v329 = vld [vmem:[%s317 + $0x4] sm:$0x1]
        %v330 = vld [vmem:[%s317 + $0x8] sm:$0x1]
        %v331 = vld [vmem:[%s317 + $0xc] sm:$0x1]
        %v332 = vld [vmem:[%s317 + $0x10] sm:$0x1]
        %v333 = vld [vmem:[%s317 + $0x14] sm:$0x1]
        %v334 = vld [vmem:[%s317 + $0x18] sm:$0x1]
        %v335 = vld [vmem:[%s317 + $0x1c] sm:$0x1]
        %v336 = vpack.c.bf16 %v328, %v328
        %v337 = vpack.c.bf16 %v329, %v329
        %v338 = vpack.c.bf16 %v330, %v330
        %v339 = vpack.c.bf16 %v331, %v331
        %v340 = vpack.c.bf16 %v332, %v332
        %v341 = vpack.c.bf16 %v333, %v333
        %v342 = vpack.c.bf16 %v334, %v334
        %v343 = vpack.c.bf16 %v335, %v335
        %v344 = vld [vmem:[#allocation2] sm:$0xf]
        %v345 = vld [vmem:[#allocation2 + $0x4] sm:$0xf]
        %v346 = vld [vmem:[#allocation2 + $0x8] sm:$0xf]
        %v347 = vld [vmem:[#allocation2 + $0xc] sm:$0xf]
        %v348 = vld [vmem:[#allocation2 + $0x10] sm:$0xf]
        %v349 = vld [vmem:[#allocation2 + $0x14] sm:$0xf]
        %v350 = vld [vmem:[#allocation2 + $0x18] sm:$0xf]
        %v351 = vld [vmem:[#allocation2 + $0x1c] sm:$0xf]
        %v352 = vld [vmem:[#allocation2 + $0x20] sm:$0xf]
        %v353 = vld [vmem:[#allocation2 + $0x24] sm:$0xf]
        %v354 = vld [vmem:[#allocation2 + $0x28] sm:$0xf]
        %v355 = vld [vmem:[#allocation2 + $0x2c] sm:$0xf]
        %v356 = vld [vmem:[#allocation2 + $0x30] sm:$0xf]
        %v357 = vld [vmem:[#allocation2 + $0x34] sm:$0xf]
        %v358 = vld [vmem:[#allocation2 + $0x38] sm:$0xf]
        %v359 = vld [vmem:[#allocation2 + $0x3c] sm:$0xf]
        %v360 = vld [vmem:[#allocation2 + $0x40] sm:$0xf]
        %v361 = vld [vmem:[#allocation2 + $0x44] sm:$0xf]
        %v362 = vld [vmem:[#allocation2 + $0x48] sm:$0xf]
        %v363 = vld [vmem:[#allocation2 + $0x4c] sm:$0xf]
        %v364 = vld [vmem:[#allocation2 + $0x50] sm:$0xf]
        %v365 = vld [vmem:[#allocation2 + $0x54] sm:$0xf]
        %v366 = vld [vmem:[#allocation2 + $0x58] sm:$0xf]
        %v367 = vld [vmem:[#allocation2 + $0x5c] sm:$0xf]
        %v368 = vld [vmem:[#allocation2 + $0x60] sm:$0xf]
        %v369 = vld [vmem:[#allocation2 + $0x64] sm:$0xf]
        %v370 = vld [vmem:[#allocation2 + $0x68] sm:$0xf]
        %v371 = vld [vmem:[#allocation2 + $0x6c] sm:$0xf]
        %v372 = vld [vmem:[#allocation2 + $0x70] sm:$0xf]
        %v373 = vld [vmem:[#allocation2 + $0x74] sm:$0xf]
        %v374 = vld [vmem:[#allocation2 + $0x78] sm:$0xf]
        %v375 = vld [vmem:[#allocation2 + $0x7c] sm:$0xf]
        %v384 = vunpack.c.l.b16 %v336
        %v385 = vunpack.c.l.b16 %v337
        %v386 = vunpack.c.l.b16 %v338
        %v387 = vunpack.c.l.b16 %v339
        %v388 = vunpack.c.l.b16 %v340
        %v389 = vunpack.c.l.b16 %v341
        %v390 = vunpack.c.l.b16 %v342
        %v391 = vunpack.c.l.b16 %v343
        %v392 = vrot.slane %v385, 7
        %vm393 = vcmask 1041409
        %v394 = vsel %vm393, %v392, %v384
        %v395 = vrot.slane %v386, 6
        %vm396 = vcmask 1042434
        %v397 = vsel %vm396, %v395, %v394
        %v398 = vrot.slane %v387, 5
        %vm399 = vcmask 1043459
        %v400 = vsel %vm399, %v398, %v397
        %v401 = vrot.slane %v388, 4
        %vm402 = vcmask 1044484
        %v403 = vsel %vm402, %v401, %v400
        %v404 = vrot.slane %v389, 3
        %vm405 = vcmask 1045509
        %v406 = vsel %vm405, %v404, %v403
        %v407 = vrot.slane %v390, 2
        %vm408 = vcmask 1046534
        %v409 = vsel %vm408, %v407, %v406
        %v410 = vrot.slane %v391, 1
        %vm411 = vcmask 1047559
        %v412 = vsel %vm411, %v410, %v409
        %v413 = vpack.c.b16 %v412, %v412
        %v431 = vunpack.c.l.b16 %v360
        %v432 = vunpack.c.l.b16 %v361
        %v433 = vunpack.c.l.b16 %v362
        %v434 = vunpack.c.l.b16 %v363
        %v435 = vunpack.c.l.b16 %v364
        %v436 = vunpack.c.l.b16 %v365
        %v437 = vunpack.c.l.b16 %v366
        %v438 = vunpack.c.l.b16 %v367
        %v439 = vunpack.c.l.b16 %v368
        %v440 = vunpack.c.l.b16 %v369
        %v441 = vunpack.c.l.b16 %v370
        %v442 = vunpack.c.l.b16 %v371
        %v443 = vunpack.c.l.b16 %v372
        %v444 = vunpack.c.l.b16 %v373
        %v445 = vunpack.c.l.b16 %v374
        %v446 = vunpack.c.l.b16 %v375
        %v447 = vpack.c.b16 %v432, %v431
        %v448 = vpack.c.b16 %v434, %v433
        %v449 = vpack.c.b16 %v436, %v435
        %v450 = vpack.c.b16 %v438, %v437
        %v451 = vpack.c.b16 %v440, %v439
        %v452 = vpack.c.b16 %v442, %v441
        %v453 = vpack.c.b16 %v444, %v443
        %v454 = vpack.c.b16 %v446, %v445
        %463 = vmatprep.subr.bf16.mxu0 0
        %464 = vmatpush1.bf16.msra.mxu0 %v454
        %465 = vmatprep.subr.bf16.mxu0 0
        %466 = vmatpush1.bf16.msra.mxu0 %v453
        %467 = vmatprep.subr.bf16.mxu0 0
        %468 = vmatpush1.bf16.msra.mxu0 %v452
        %469 = vmatprep.subr.bf16.mxu0 0
        %470 = vmatpush1.bf16.msra.mxu0 %v451
        %471 = vmatprep.subr.bf16.mxu0 0
        %472 = vmatpush1.bf16.msra.mxu0 %v450
        %473 = vmatprep.subr.bf16.mxu0 0
        %474 = vmatpush1.bf16.msra.mxu0 %v449
        %475 = vmatprep.subr.bf16.mxu0 0
        %476 = vmatpush1.bf16.msra.mxu0 %v448
        %477 = vmatprep.subr.bf16.mxu0 0
        %478 = vmatpush1.bf16.msra.mxu0 %v447
        %479 = vmatprep.subr.bf16.mxu0 0
        %480 = vmatpush2.bf16.msra.mxu0 0
        %481 = vmatprep.subr.bf16.mxu0 0
        %482 = vmatpush2.bf16.msra.mxu0 0
        %483 = vmatprep.subr.bf16.mxu0 0
        %484 = vmatpush2.bf16.msra.mxu0 0
        %485 = vmatprep.subr.bf16.mxu0 0
        %486 = vmatpush2.bf16.msra.mxu0 0
        %487 = vmatprep.subr.bf16.mxu0 0
        %488 = vmatpush2.bf16.msra.mxu0 0
        %489 = vmatprep.subr.bf16.mxu0 0
        %490 = vmatpush2.bf16.msra.mxu0 0
        %491 = vmatprep.subr.bf16.mxu0 0
        %492 = vmatpush2.bf16.msra.mxu0 0
        %493 = vmatprep.subr.bf16.mxu0 0
        %494 = vmatpush2.bf16.msra.mxu0 0
        %495 = vmatprep.mubr.bf16.mxu0 0
        %496 = vmatmul.mubr.bf16.gmra.mxu0 %v413
        %v497 = vpop.f32.mrf.mxu0
        %v498 = vadd.f32 0.0, %v497
        %v499 = vpop.f32.mrf.mxu0
        %v500 = vpop.f32.mrf.mxu0
        %v501 = vpop.f32.mrf.mxu0
        %502 = vdwg.mxu0
        %v519 = vunpack.c.l.b16 %v344
        %v520 = vunpack.c.l.b16 %v345
        %v521 = vunpack.c.l.b16 %v346
        %v522 = vunpack.c.l.b16 %v347
        %v523 = vunpack.c.l.b16 %v348
        %v524 = vunpack.c.l.b16 %v349
        %v525 = vunpack.c.l.b16 %v350
        %v526 = vunpack.c.l.b16 %v351
        %v527 = vunpack.c.l.b16 %v352
        %v528 = vunpack.c.l.b16 %v353
        %v529 = vunpack.c.l.b16 %v354
        %v530 = vunpack.c.l.b16 %v355
        %v531 = vunpack.c.l.b16 %v356
        %v532 = vunpack.c.l.b16 %v357
        %v533 = vunpack.c.l.b16 %v358
        %v534 = vunpack.c.l.b16 %v359
        %v535 = vpack.c.b16 %v520, %v519
        %v536 = vpack.c.b16 %v522, %v521
        %v537 = vpack.c.b16 %v524, %v523
        %v538 = vpack.c.b16 %v526, %v525
        %v539 = vpack.c.b16 %v528, %v527
        %v540 = vpack.c.b16 %v530, %v529
        %v541 = vpack.c.b16 %v532, %v531
        %v542 = vpack.c.b16 %v534, %v533
        %551 = vmatprep.subr.bf16.mxu0 0
        %552 = vmatpush1.bf16.msra.mxu0 %v542
        %553 = vmatprep.subr.bf16.mxu0 0
        %554 = vmatpush1.bf16.msra.mxu0 %v541
        %555 = vmatprep.subr.bf16.mxu0 0
        %556 = vmatpush1.bf16.msra.mxu0 %v540
        %557 = vmatprep.subr.bf16.mxu0 0
        %558 = vmatpush1.bf16.msra.mxu0 %v539
        %559 = vmatprep.subr.bf16.mxu0 0
        %560 = vmatpush1.bf16.msra.mxu0 %v538
        %561 = vmatprep.subr.bf16.mxu0 0
        %562 = vmatpush1.bf16.msra.mxu0 %v537
        %563 = vmatprep.subr.bf16.mxu0 0
        %564 = vmatpush1.bf16.msra.mxu0 %v536
        %565 = vmatprep.subr.bf16.mxu0 0
        %566 = vmatpush1.bf16.msra.mxu0 %v535
        %567 = vmatprep.subr.bf16.mxu0 0
        %568 = vmatpush2.bf16.msra.mxu0 0
        %569 = vmatprep.subr.bf16.mxu0 0
        %570 = vmatpush2.bf16.msra.mxu0 0
        %571 = vmatprep.subr.bf16.mxu0 0
        %572 = vmatpush2.bf16.msra.mxu0 0
        %573 = vmatprep.subr.bf16.mxu0 0
        %574 = vmatpush2.bf16.msra.mxu0 0
        %575 = vmatprep.subr.bf16.mxu0 0
        %576 = vmatpush2.bf16.msra.mxu0 0
        %577 = vmatprep.subr.bf16.mxu0 0
        %578 = vmatpush2.bf16.msra.mxu0 0
        %579 = vmatprep.subr.bf16.mxu0 0
        %580 = vmatpush2.bf16.msra.mxu0 0
        %581 = vmatprep.subr.bf16.mxu0 0
        %582 = vmatpush2.bf16.msra.mxu0 0
        %583 = vmatprep.mubr.bf16.mxu0 0
        %584 = vmatmul.mubr.bf16.gmra.mxu0 %v327
        %v585 = vpop.f32.mrf.mxu0
        %v586 = vadd.f32 %v498, %v585
        %v587 = vpop.f32.mrf.mxu0
        %v588 = vpop.f32.mrf.mxu0
        %v589 = vpop.f32.mrf.mxu0
        %590 = vdwg.mxu0
        %v591 = vld [vmem:[%s3] sm:$0x1]
        %v593 = vlaneseq
        %v594 = vshrl.u32 %v593, 7
        %v595 = vsub.s32 0, %v594
        %v596 = vrot.slane %v591, %v595
        %v598 = vadd.f32 %v586, %v596
        %v599 = vtanh.pop %v598
        %v600 = vpack.c.bf16 %v599, %v599
        %v601 = vld [vmem:[%s317 + $0x1] sm:$0x1]
        %v602 = vld [vmem:[%s317 + $0x5] sm:$0x1]
        %v603 = vld [vmem:[%s317 + $0x9] sm:$0x1]
        %v604 = vld [vmem:[%s317 + $0xd] sm:$0x1]
        %v605 = vld [vmem:[%s317 + $0x11] sm:$0x1]
        %v606 = vld [vmem:[%s317 + $0x15] sm:$0x1]
        %v607 = vld [vmem:[%s317 + $0x19] sm:$0x1]
        %v608 = vld [vmem:[%s317 + $0x1d] sm:$0x1]
        %v609 = vpack.c.bf16 %v601, %v601
        %v610 = vpack.c.bf16 %v602, %v602
        %v611 = vpack.c.bf16 %v603, %v603
        %v612 = vpack.c.bf16 %v604, %v604
        %v613 = vpack.c.bf16 %v605, %v605
        %v614 = vpack.c.bf16 %v606, %v606
        %v615 = vpack.c.bf16 %v607, %v607
        %v616 = vpack.c.bf16 %v608, %v608
        %s617 = scalar_lea.vmem [#allocation2], 128
        %v618 = vld [vmem:[%s617] sm:$0xf]
        %v619 = vld [vmem:[%s617 + $0x4] sm:$0xf]
        %v620 = vld [vmem:[%s617 + $0x8] sm:$0xf]
        %v621 = vld [vmem:[%s617 + $0xc] sm:$0xf]
        %v622 = vld [vmem:[%s617 + $0x10] sm:$0xf]
        %v623 = vld [vmem:[%s617 + $0x14] sm:$0xf]
        %v624 = vld [vmem:[%s617 + $0x18] sm:$0xf]
        %v625 = vld [vmem:[%s617 + $0x1c] sm:$0xf]
        %v626 = vld [vmem:[%s617 + $0x20] sm:$0xf]
        %v627 = vld [vmem:[%s617 + $0x24] sm:$0xf]
        %v628 = vld [vmem:[%s617 + $0x28] sm:$0xf]
        %v629 = vld [vmem:[%s617 + $0x2c] sm:$0xf]
        %v630 = vld [vmem:[%s617 + $0x30] sm:$0xf]
        %v631 = vld [vmem:[%s617 + $0x34] sm:$0xf]
        %v632 = vld [vmem:[%s617 + $0x38] sm:$0xf]
        %v633 = vld [vmem:[%s617 + $0x3c] sm:$0xf]
        %v634 = vld [vmem:[%s617 + $0x40] sm:$0xf]
        %v635 = vld [vmem:[%s617 + $0x44] sm:$0xf]
        %v636 = vld [vmem:[%s617 + $0x48] sm:$0xf]
        %v637 = vld [vmem:[%s617 + $0x4c] sm:$0xf]
        %v638 = vld [vmem:[%s617 + $0x50] sm:$0xf]
        %v639 = vld [vmem:[%s617 + $0x54] sm:$0xf]
        %v640 = vld [vmem:[%s617 + $0x58] sm:$0xf]
        %v641 = vld [vmem:[%s617 + $0x5c] sm:$0xf]
        %v642 = vld [vmem:[%s617 + $0x60] sm:$0xf]
        %v643 = vld [vmem:[%s617 + $0x64] sm:$0xf]
        %v644 = vld [vmem:[%s617 + $0x68] sm:$0xf]
        %v645 = vld [vmem:[%s617 + $0x6c] sm:$0xf]
        %v646 = vld [vmem:[%s617 + $0x70] sm:$0xf]
        %v647 = vld [vmem:[%s617 + $0x74] sm:$0xf]
        %v648 = vld [vmem:[%s617 + $0x78] sm:$0xf]
        %v649 = vld [vmem:[%s617 + $0x7c] sm:$0xf]
        %v658 = vunpack.c.l.b16 %v609
        %v659 = vunpack.c.l.b16 %v610
        %v660 = vunpack.c.l.b16 %v611
        %v661 = vunpack.c.l.b16 %v612
        %v662 = vunpack.c.l.b16 %v613
        %v663 = vunpack.c.l.b16 %v614
        %v664 = vunpack.c.l.b16 %v615
        %v665 = vunpack.c.l.b16 %v616
        %v666 = vrot.slane %v659, 7
        %v667 = vsel %vm393, %v666, %v658
        %v668 = vrot.slane %v660, 6
        %v669 = vsel %vm396, %v668, %v667
        %v670 = vrot.slane %v661, 5
        %v671 = vsel %vm399, %v670, %v669
        %v672 = vrot.slane %v662, 4
        %v673 = vsel %vm402, %v672, %v671
        %v674 = vrot.slane %v663, 3
        %v675 = vsel %vm405, %v674, %v673
        %v676 = vrot.slane %v664, 2
        %v677 = vsel %vm408, %v676, %v675
        %v678 = vrot.slane %v665, 1
        %v679 = vsel %vm411, %v678, %v677
        %v680 = vpack.c.b16 %v679, %v679
        %v698 = vunpack.c.l.b16 %v634
        %v699 = vunpack.c.l.b16 %v635
        %v700 = vunpack.c.l.b16 %v636
        %v701 = vunpack.c.l.b16 %v637
        %v702 = vunpack.c.l.b16 %v638
        %v703 = vunpack.c.l.b16 %v639
        %v704 = vunpack.c.l.b16 %v640
        %v705 = vunpack.c.l.b16 %v641
        %v706 = vunpack.c.l.b16 %v642
        %v707 = vunpack.c.l.b16 %v643
        %v708 = vunpack.c.l.b16 %v644
        %v709 = vunpack.c.l.b16 %v645
        %v710 = vunpack.c.l.b16 %v646
        %v711 = vunpack.c.l.b16 %v647
        %v712 = vunpack.c.l.b16 %v648
        %v713 = vunpack.c.l.b16 %v649
        %v714 = vpack.c.b16 %v699, %v698
        %v715 = vpack.c.b16 %v701, %v700
        %v716 = vpack.c.b16 %v703, %v702
        %v717 = vpack.c.b16 %v705, %v704
        %v718 = vpack.c.b16 %v707, %v706
        %v719 = vpack.c.b16 %v709, %v708
        %v720 = vpack.c.b16 %v711, %v710
        %v721 = vpack.c.b16 %v713, %v712
        %730 = vmatprep.subr.bf16.mxu0 0
        %731 = vmatpush1.bf16.msra.mxu0 %v721
        %732 = vmatprep.subr.bf16.mxu0 0
        %733 = vmatpush1.bf16.msra.mxu0 %v720
        %734 = vmatprep.subr.bf16.mxu0 0
        %735 = vmatpush1.bf16.msra.mxu0 %v719
        %736 = vmatprep.subr.bf16.mxu0 0
        %737 = vmatpush1.bf16.msra.mxu0 %v718
        %738 = vmatprep.subr.bf16.mxu0 0
        %739 = vmatpush1.bf16.msra.mxu0 %v717
        %740 = vmatprep.subr.bf16.mxu0 0
        %741 = vmatpush1.bf16.msra.mxu0 %v716
        %742 = vmatprep.subr.bf16.mxu0 0
        %743 = vmatpush1.bf16.msra.mxu0 %v715
        %744 = vmatprep.subr.bf16.mxu0 0
        %745 = vmatpush1.bf16.msra.mxu0 %v714
        %746 = vmatprep.subr.bf16.mxu0 0
        %747 = vmatpush2.bf16.msra.mxu0 0
        %748 = vmatprep.subr.bf16.mxu0 0
        %749 = vmatpush2.bf16.msra.mxu0 0
        %750 = vmatprep.subr.bf16.mxu0 0
        %751 = vmatpush2.bf16.msra.mxu0 0
        %752 = vmatprep.subr.bf16.mxu0 0
        %753 = vmatpush2.bf16.msra.mxu0 0
        %754 = vmatprep.subr.bf16.mxu0 0
        %755 = vmatpush2.bf16.msra.mxu0 0
        %756 = vmatprep.subr.bf16.mxu0 0
        %757 = vmatpush2.bf16.msra.mxu0 0
        %758 = vmatprep.subr.bf16.mxu0 0
        %759 = vmatpush2.bf16.msra.mxu0 0
        %760 = vmatprep.subr.bf16.mxu0 0
        %761 = vmatpush2.bf16.msra.mxu0 0
        %762 = vmatprep.mubr.bf16.mxu0 0
        %763 = vmatmul.mubr.bf16.gmra.mxu0 %v680
        %v764 = vpop.f32.mrf.mxu0
        %v765 = vadd.f32 0.0, %v764
        %v766 = vpop.f32.mrf.mxu0
        %v767 = vpop.f32.mrf.mxu0
        %v768 = vpop.f32.mrf.mxu0
        %769 = vdwg.mxu0
        %v786 = vunpack.c.l.b16 %v618
        %v787 = vunpack.c.l.b16 %v619
        %v788 = vunpack.c.l.b16 %v620
        %v789 = vunpack.c.l.b16 %v621
        %v790 = vunpack.c.l.b16 %v622
        %v791 = vunpack.c.l.b16 %v623
        %v792 = vunpack.c.l.b16 %v624
        %v793 = vunpack.c.l.b16 %v625
        %v794 = vunpack.c.l.b16 %v626
        %v795 = vunpack.c.l.b16 %v627
        %v796 = vunpack.c.l.b16 %v628
        %v797 = vunpack.c.l.b16 %v629
        %v798 = vunpack.c.l.b16 %v630
        %v799 = vunpack.c.l.b16 %v631
        %v800 = vunpack.c.l.b16 %v632
        %v801 = vunpack.c.l.b16 %v633
        %v802 = vpack.c.b16 %v787, %v786
        %v803 = vpack.c.b16 %v789, %v788
        %v804 = vpack.c.b16 %v791, %v790
        %v805 = vpack.c.b16 %v793, %v792
        %v806 = vpack.c.b16 %v795, %v794
        %v807 = vpack.c.b16 %v797, %v796
        %v808 = vpack.c.b16 %v799, %v798
        %v809 = vpack.c.b16 %v801, %v800
        %818 = vmatprep.subr.bf16.mxu0 0
        %819 = vmatpush1.bf16.msra.mxu0 %v809
        %820 = vmatprep.subr.bf16.mxu0 0
        %821 = vmatpush1.bf16.msra.mxu0 %v808
        %822 = vmatprep.subr.bf16.mxu0 0
        %823 = vmatpush1.bf16.msra.mxu0 %v807
        %824 = vmatprep.subr.bf16.mxu0 0
        %825 = vmatpush1.bf16.msra.mxu0 %v806
        %826 = vmatprep.subr.bf16.mxu0 0
        %827 = vmatpush1.bf16.msra.mxu0 %v805
        %828 = vmatprep.subr.bf16.mxu0 0
        %829 = vmatpush1.bf16.msra.mxu0 %v804
        %830 = vmatprep.subr.bf16.mxu0 0
        %831 = vmatpush1.bf16.msra.mxu0 %v803
        %832 = vmatprep.subr.bf16.mxu0 0
        %833 = vmatpush1.bf16.msra.mxu0 %v802
        %834 = vmatprep.subr.bf16.mxu0 0
        %835 = vmatpush2.bf16.msra.mxu0 0
        %836 = vmatprep.subr.bf16.mxu0 0
        %837 = vmatpush2.bf16.msra.mxu0 0
        %838 = vmatprep.subr.bf16.mxu0 0
        %839 = vmatpush2.bf16.msra.mxu0 0
        %840 = vmatprep.subr.bf16.mxu0 0
        %841 = vmatpush2.bf16.msra.mxu0 0
        %842 = vmatprep.subr.bf16.mxu0 0
        %843 = vmatpush2.bf16.msra.mxu0 0
        %844 = vmatprep.subr.bf16.mxu0 0
        %845 = vmatpush2.bf16.msra.mxu0 0
        %846 = vmatprep.subr.bf16.mxu0 0
        %847 = vmatpush2.bf16.msra.mxu0 0
        %848 = vmatprep.subr.bf16.mxu0 0
        %849 = vmatpush2.bf16.msra.mxu0 0
        %850 = vmatprep.mubr.bf16.mxu0 0
        %851 = vmatmul.mubr.bf16.gmra.mxu0 %v600
        %v852 = vpop.f32.mrf.mxu0
        %v853 = vadd.f32 %v765, %v852
        %v854 = vpop.f32.mrf.mxu0
        %v855 = vpop.f32.mrf.mxu0
        %v856 = vpop.f32.mrf.mxu0
        %857 = vdwg.mxu0
        %s858 = scalar_lea.vmem %s3, 1
        %v859 = vld [vmem:[%s858] sm:$0x1]
        %v861 = vlaneseq
        %v862 = vshrl.u32 %v861, 7
        %v863 = vsub.s32 0, %v862
        %v864 = vrot.slane %v859, %v863
        %v866 = vadd.f32 %v853, %v864
        %v867 = vtanh.pop %v866
        %v868 = vpack.c.bf16 %v867, %v867
        %v869 = vld [vmem:[%s317 + $0x2] sm:$0x1]
        %v870 = vld [vmem:[%s317 + $0x6] sm:$0x1]
        %v871 = vld [vmem:[%s317 + $0xa] sm:$0x1]
        %v872 = vld [vmem:[%s317 + $0xe] sm:$0x1]
        %v873 = vld [vmem:[%s317 + $0x12] sm:$0x1]
        %v874 = vld [vmem:[%s317 + $0x16] sm:$0x1]
        %v875 = vld [vmem:[%s317 + $0x1a] sm:$0x1]
        %v876 = vld [vmem:[%s317 + $0x1e] sm:$0x1]
        %v877 = vpack.c.bf16 %v869, %v869
        %v878 = vpack.c.bf16 %v870, %v870
        %v879 = vpack.c.bf16 %v871, %v871
        %v880 = vpack.c.bf16 %v872, %v872
        %v881 = vpack.c.bf16 %v873, %v873
        %v882 = vpack.c.bf16 %v874, %v874
        %v883 = vpack.c.bf16 %v875, %v875
        %v884 = vpack.c.bf16 %v876, %v876
        %s885 = scalar_lea.vmem [#allocation2], 256
        %v886 = vld [vmem:[%s885] sm:$0xf]
        %v887 = vld [vmem:[%s885 + $0x4] sm:$0xf]
        %v888 = vld [vmem:[%s885 + $0x8] sm:$0xf]
        %v889 = vld [vmem:[%s885 + $0xc] sm:$0xf]
        %v890 = vld [vmem:[%s885 + $0x10] sm:$0xf]
        %v891 = vld [vmem:[%s885 + $0x14] sm:$0xf]
        %v892 = vld [vmem:[%s885 + $0x18] sm:$0xf]
        %v893 = vld [vmem:[%s885 + $0x1c] sm:$0xf]
        %v894 = vld [vmem:[%s885 + $0x20] sm:$0xf]
        %v895 = vld [vmem:[%s885 + $0x24] sm:$0xf]
        %v896 = vld [vmem:[%s885 + $0x28] sm:$0xf]
        %v897 = vld [vmem:[%s885 + $0x2c] sm:$0xf]
        %v898 = vld [vmem:[%s885 + $0x30] sm:$0xf]
        %v899 = vld [vmem:[%s885 + $0x34] sm:$0xf]
        %v900 = vld [vmem:[%s885 + $0x38] sm:$0xf]
        %v901 = vld [vmem:[%s885 + $0x3c] sm:$0xf]
        %v902 = vld [vmem:[%s885 + $0x40] sm:$0xf]
        %v903 = vld [vmem:[%s885 + $0x44] sm:$0xf]
        %v904 = vld [vmem:[%s885 + $0x48] sm:$0xf]
        %v905 = vld [vmem:[%s885 + $0x4c] sm:$0xf]
        %v906 = vld [vmem:[%s885 + $0x50] sm:$0xf]
        %v907 = vld [vmem:[%s885 + $0x54] sm:$0xf]
        %v908 = vld [vmem:[%s885 + $0x58] sm:$0xf]
        %v909 = vld [vmem:[%s885 + $0x5c] sm:$0xf]
        %v910 = vld [vmem:[%s885 + $0x60] sm:$0xf]
        %v911 = vld [vmem:[%s885 + $0x64] sm:$0xf]
        %v912 = vld [vmem:[%s885 + $0x68] sm:$0xf]
        %v913 = vld [vmem:[%s885 + $0x6c] sm:$0xf]
        %v914 = vld [vmem:[%s885 + $0x70] sm:$0xf]
        %v915 = vld [vmem:[%s885 + $0x74] sm:$0xf]
        %v916 = vld [vmem:[%s885 + $0x78] sm:$0xf]
        %v917 = vld [vmem:[%s885 + $0x7c] sm:$0xf]
        %v926 = vunpack.c.l.b16 %v877
        %v927 = vunpack.c.l.b16 %v878
        %v928 = vunpack.c.l.b16 %v879
        %v929 = vunpack.c.l.b16 %v880
        %v930 = vunpack.c.l.b16 %v881
        %v931 = vunpack.c.l.b16 %v882
        %v932 = vunpack.c.l.b16 %v883
        %v933 = vunpack.c.l.b16 %v884
        %v934 = vrot.slane %v927, 7
        %v935 = vsel %vm393, %v934, %v926
        %v936 = vrot.slane %v928, 6
        %v937 = vsel %vm396, %v936, %v935
        %v938 = vrot.slane %v929, 5
        %v939 = vsel %vm399, %v938, %v937
        %v940 = vrot.slane %v930, 4
        %v941 = vsel %vm402, %v940, %v939
        %v942 = vrot.slane %v931, 3
        %v943 = vsel %vm405, %v942, %v941
        %v944 = vrot.slane %v932, 2
        %v945 = vsel %vm408, %v944, %v943
        %v946 = vrot.slane %v933, 1
        %v947 = vsel %vm411, %v946, %v945
        %v948 = vpack.c.b16 %v947, %v947
        %v966 = vunpack.c.l.b16 %v902
        %v967 = vunpack.c.l.b16 %v903
        %v968 = vunpack.c.l.b16 %v904
        %v969 = vunpack.c.l.b16 %v905
        %v970 = vunpack.c.l.b16 %v906
        %v971 = vunpack.c.l.b16 %v907
        %v972 = vunpack.c.l.b16 %v908
        %v973 = vunpack.c.l.b16 %v909
        %v974 = vunpack.c.l.b16 %v910
        %v975 = vunpack.c.l.b16 %v911
        %v976 = vunpack.c.l.b16 %v912
        %v977 = vunpack.c.l.b16 %v913
        %v978 = vunpack.c.l.b16 %v914
        %v979 = vunpack.c.l.b16 %v915
        %v980 = vunpack.c.l.b16 %v916
        %v981 = vunpack.c.l.b16 %v917
        %v982 = vpack.c.b16 %v967, %v966
        %v983 = vpack.c.b16 %v969, %v968
        %v984 = vpack.c.b16 %v971, %v970
        %v985 = vpack.c.b16 %v973, %v972
        %v986 = vpack.c.b16 %v975, %v974
        %v987 = vpack.c.b16 %v977, %v976
        %v988 = vpack.c.b16 %v979, %v978
        %v989 = vpack.c.b16 %v981, %v980
        %998 = vmatprep.subr.bf16.mxu0 0
        %999 = vmatpush1.bf16.msra.mxu0 %v989
        %1000 = vmatprep.subr.bf16.mxu0 0
        %1001 = vmatpush1.bf16.msra.mxu0 %v988
        %1002 = vmatprep.subr.bf16.mxu0 0
        %1003 = vmatpush1.bf16.msra.mxu0 %v987
        %1004 = vmatprep.subr.bf16.mxu0 0
        %1005 = vmatpush1.bf16.msra.mxu0 %v986
        %1006 = vmatprep.subr.bf16.mxu0 0
        %1007 = vmatpush1.bf16.msra.mxu0 %v985
        %1008 = vmatprep.subr.bf16.mxu0 0
        %1009 = vmatpush1.bf16.msra.mxu0 %v984
        %1010 = vmatprep.subr.bf16.mxu0 0
        %1011 = vmatpush1.bf16.msra.mxu0 %v983
        %1012 = vmatprep.subr.bf16.mxu0 0
        %1013 = vmatpush1.bf16.msra.mxu0 %v982
        %1014 = vmatprep.subr.bf16.mxu0 0
        %1015 = vmatpush2.bf16.msra.mxu0 0
        %1016 = vmatprep.subr.bf16.mxu0 0
        %1017 = vmatpush2.bf16.msra.mxu0 0
        %1018 = vmatprep.subr.bf16.mxu0 0
        %1019 = vmatpush2.bf16.msra.mxu0 0
        %1020 = vmatprep.subr.bf16.mxu0 0
        %1021 = vmatpush2.bf16.msra.mxu0 0
        %1022 = vmatprep.subr.bf16.mxu0 0
        %1023 = vmatpush2.bf16.msra.mxu0 0
        %1024 = vmatprep.subr.bf16.mxu0 0
        %1025 = vmatpush2.bf16.msra.mxu0 0
        %1026 = vmatprep.subr.bf16.mxu0 0
        %1027 = vmatpush2.bf16.msra.mxu0 0
        %1028 = vmatprep.subr.bf16.mxu0 0
        %1029 = vmatpush2.bf16.msra.mxu0 0
        %1030 = vmatprep.mubr.bf16.mxu0 0
        %1031 = vmatmul.mubr.bf16.gmra.mxu0 %v948
        %v1032 = vpop.f32.mrf.mxu0
        %v1033 = vadd.f32 0.0, %v1032
        %v1034 = vpop.f32.mrf.mxu0
        %v1035 = vpop.f32.mrf.mxu0
        %v1036 = vpop.f32.mrf.mxu0
        %1037 = vdwg.mxu0
        %v1054 = vunpack.c.l.b16 %v886
        %v1055 = vunpack.c.l.b16 %v887
        %v1056 = vunpack.c.l.b16 %v888
        %v1057 = vunpack.c.l.b16 %v889
        %v1058 = vunpack.c.l.b16 %v890
        %v1059 = vunpack.c.l.b16 %v891
        %v1060 = vunpack.c.l.b16 %v892
        %v1061 = vunpack.c.l.b16 %v893
        %v1062 = vunpack.c.l.b16 %v894
        %v1063 = vunpack.c.l.b16 %v895
        %v1064 = vunpack.c.l.b16 %v896
        %v1065 = vunpack.c.l.b16 %v897
        %v1066 = vunpack.c.l.b16 %v898
        %v1067 = vunpack.c.l.b16 %v899
        %v1068 = vunpack.c.l.b16 %v900
        %v1069 = vunpack.c.l.b16 %v901
        %v1070 = vpack.c.b16 %v1055, %v1054
        %v1071 = vpack.c.b16 %v1057, %v1056
        %v1072 = vpack.c.b16 %v1059, %v1058
        %v1073 = vpack.c.b16 %v1061, %v1060
        %v1074 = vpack.c.b16 %v1063, %v1062
        %v1075 = vpack.c.b16 %v1065, %v1064
        %v1076 = vpack.c.b16 %v1067, %v1066
        %v1077 = vpack.c.b16 %v1069, %v1068
        %1086 = vmatprep.subr.bf16.mxu0 0
        %1087 = vmatpush1.bf16.msra.mxu0 %v1077
        %1088 = vmatprep.subr.bf16.mxu0 0
        %1089 = vmatpush1.bf16.msra.mxu0 %v1076
        %1090 = vmatprep.subr.bf16.mxu0 0
        %1091 = vmatpush1.bf16.msra.mxu0 %v1075
        %1092 = vmatprep.subr.bf16.mxu0 0
        %1093 = vmatpush1.bf16.msra.mxu0 %v1074
        %1094 = vmatprep.subr.bf16.mxu0 0
        %1095 = vmatpush1.bf16.msra.mxu0 %v1073
        %1096 = vmatprep.subr.bf16.mxu0 0
        %1097 = vmatpush1.bf16.msra.mxu0 %v1072
        %1098 = vmatprep.subr.bf16.mxu0 0
        %1099 = vmatpush1.bf16.msra.mxu0 %v1071
        %1100 = vmatprep.subr.bf16.mxu0 0
        %1101 = vmatpush1.bf16.msra.mxu0 %v1070
        %1102 = vmatprep.subr.bf16.mxu0 0
        %1103 = vmatpush2.bf16.msra.mxu0 0
        %1104 = vmatprep.subr.bf16.mxu0 0
        %1105 = vmatpush2.bf16.msra.mxu0 0
        %1106 = vmatprep.subr.bf16.mxu0 0
        %1107 = vmatpush2.bf16.msra.mxu0 0
        %1108 = vmatprep.subr.bf16.mxu0 0
        %1109 = vmatpush2.bf16.msra.mxu0 0
        %1110 = vmatprep.subr.bf16.mxu0 0
        %1111 = vmatpush2.bf16.msra.mxu0 0
        %1112 = vmatprep.subr.bf16.mxu0 0
        %1113 = vmatpush2.bf16.msra.mxu0 0
        %1114 = vmatprep.subr.bf16.mxu0 0
        %1115 = vmatpush2.bf16.msra.mxu0 0
        %1116 = vmatprep.subr.bf16.mxu0 0
        %1117 = vmatpush2.bf16.msra.mxu0 0
        %1118 = vmatprep.mubr.bf16.mxu0 0
        %1119 = vmatmul.mubr.bf16.gmra.mxu0 %v868
        %v1120 = vpop.f32.mrf.mxu0
        %v1121 = vadd.f32 %v1033, %v1120
        %v1122 = vpop.f32.mrf.mxu0
        %v1123 = vpop.f32.mrf.mxu0
        %v1124 = vpop.f32.mrf.mxu0
        %1125 = vdwg.mxu0
        %s1126 = scalar_lea.vmem %s3, 2
        %v1127 = vld [vmem:[%s1126] sm:$0x1]
        %v1129 = vlaneseq
        %v1130 = vshrl.u32 %v1129, 7
        %v1131 = vsub.s32 0, %v1130
        %v1132 = vrot.slane %v1127, %v1131
        %v1134 = vadd.f32 %v1121, %v1132
        %v1135 = vtanh.pop %v1134
        %v1136 = vpack.c.bf16 %v1135, %v1135
        %v1138 = vcombine.high %v599, %v599
        %v1140 = vunpack.c.l.s4 1966171168
        %v1141 = vunpack.c.0.s8 %v1140
        %v1142 = vlaneseq
        %v1143 = vshrl.u32 %v1142, 7
        %v1144 = vsub.s32 %v1141, %v1143
        %v1145 = vrot.slane %v599, %v1144
        %v1147 = vunpack.c.l.s4 1966171168
        %v1148 = vunpack.c.0.s8 %v1147
        %v1149 = vlaneseq
        %v1150 = vshrl.u32 %v1149, 7
        %v1151 = vsub.s32 %v1148, %v1150
        %v1152 = vrot.slane %v1138, %v1151
        %v1153 = vcombine.high %v1145, %v1145
        %v1154 = vcombine.high %v1152, %v1152
        %v1156 = vunpack.c.l.s4 1966171168
        %v1157 = vunpack.c.0.s8 %v1156
        %v1158 = vlaneseq
        %v1159 = vshrl.u32 %v1158, 7
        %v1160 = vsub.s32 %v1157, %v1159
        %v1161 = vrot.slane %v1145, %v1160
        %v1163 = vunpack.c.l.s4 1966171168
        %v1164 = vunpack.c.0.s8 %v1163
        %v1165 = vlaneseq
        %v1166 = vshrl.u32 %v1165, 7
        %v1167 = vsub.s32 %v1164, %v1166
        %v1168 = vrot.slane %v1152, %v1167
        %v1170 = vunpack.c.l.s4 1966171168
        %v1171 = vunpack.c.0.s8 %v1170
        %v1172 = vlaneseq
        %v1173 = vshrl.u32 %v1172, 7
        %v1174 = vsub.s32 %v1171, %v1173
        %v1175 = vrot.slane %v1153, %v1174
        %v1177 = vunpack.c.l.s4 1966171168
        %v1178 = vunpack.c.0.s8 %v1177
        %v1179 = vlaneseq
        %v1180 = vshrl.u32 %v1179, 7
        %v1181 = vsub.s32 %v1178, %v1180
        %v1182 = vrot.slane %v1154, %v1181
        %v1183 = vcombine.high %v1161, %v1161
        %v1184 = vcombine.high %v1168, %v1168
        %v1185 = vcombine.high %v1175, %v1175
        %v1186 = vcombine.high %v1182, %v1182
        %v1196 = vcombine.high %v867, %v867
        %v1198 = vunpack.c.l.s4 1966171168
        %v1199 = vunpack.c.0.s8 %v1198
        %v1200 = vlaneseq
        %v1201 = vshrl.u32 %v1200, 7
        %v1202 = vsub.s32 %v1199, %v1201
        %v1203 = vrot.slane %v867, %v1202
        %v1205 = vunpack.c.l.s4 1966171168
        %v1206 = vunpack.c.0.s8 %v1205
        %v1207 = vlaneseq
        %v1208 = vshrl.u32 %v1207, 7
        %v1209 = vsub.s32 %v1206, %v1208
        %v1210 = vrot.slane %v1196, %v1209
        %v1211 = vcombine.high %v1203, %v1203
        %v1212 = vcombine.high %v1210, %v1210
        %v1214 = vunpack.c.l.s4 1966171168
        %v1215 = vunpack.c.0.s8 %v1214
        %v1216 = vlaneseq
        %v1217 = vshrl.u32 %v1216, 7
        %v1218 = vsub.s32 %v1215, %v1217
        %v1219 = vrot.slane %v1203, %v1218
        %v1221 = vunpack.c.l.s4 1966171168
        %v1222 = vunpack.c.0.s8 %v1221
        %v1223 = vlaneseq
        %v1224 = vshrl.u32 %v1223, 7
        %v1225 = vsub.s32 %v1222, %v1224
        %v1226 = vrot.slane %v1210, %v1225
        %v1228 = vunpack.c.l.s4 1966171168
        %v1229 = vunpack.c.0.s8 %v1228
        %v1230 = vlaneseq
        %v1231 = vshrl.u32 %v1230, 7
        %v1232 = vsub.s32 %v1229, %v1231
        %v1233 = vrot.slane %v1211, %v1232
        %v1235 = vunpack.c.l.s4 1966171168
        %v1236 = vunpack.c.0.s8 %v1235
        %v1237 = vlaneseq
        %v1238 = vshrl.u32 %v1237, 7
        %v1239 = vsub.s32 %v1236, %v1238
        %v1240 = vrot.slane %v1212, %v1239
        %v1241 = vcombine.high %v1219, %v1219
        %v1242 = vcombine.high %v1226, %v1226
        %v1243 = vcombine.high %v1233, %v1233
        %v1244 = vcombine.high %v1240, %v1240
        %v1246 = vcombine.high %v1135, %v1135
        %v1248 = vunpack.c.l.s4 1966171168
        %v1249 = vunpack.c.0.s8 %v1248
        %v1250 = vlaneseq
        %v1251 = vshrl.u32 %v1250, 7
        %v1252 = vsub.s32 %v1249, %v1251
        %v1253 = vrot.slane %v1135, %v1252
        %v1255 = vunpack.c.l.s4 1966171168
        %v1256 = vunpack.c.0.s8 %v1255
        %v1257 = vlaneseq
        %v1258 = vshrl.u32 %v1257, 7
        %v1259 = vsub.s32 %v1256, %v1258
        %v1260 = vrot.slane %v1246, %v1259
        %v1261 = vcombine.high %v1253, %v1253
        %v1262 = vcombine.high %v1260, %v1260
        %v1264 = vunpack.c.l.s4 1966171168
        %v1265 = vunpack.c.0.s8 %v1264
        %v1266 = vlaneseq
        %v1267 = vshrl.u32 %v1266, 7
        %v1268 = vsub.s32 %v1265, %v1267
        %v1269 = vrot.slane %v1253, %v1268
        %v1271 = vunpack.c.l.s4 1966171168
        %v1272 = vunpack.c.0.s8 %v1271
        %v1273 = vlaneseq
        %v1274 = vshrl.u32 %v1273, 7
        %v1275 = vsub.s32 %v1272, %v1274
        %v1276 = vrot.slane %v1260, %v1275
        %v1278 = vunpack.c.l.s4 1966171168
        %v1279 = vunpack.c.0.s8 %v1278
        %v1280 = vlaneseq
        %v1281 = vshrl.u32 %v1280, 7
        %v1282 = vsub.s32 %v1279, %v1281
        %v1283 = vrot.slane %v1261, %v1282
        %v1285 = vunpack.c.l.s4 1966171168
        %v1286 = vunpack.c.0.s8 %v1285
        %v1287 = vlaneseq
        %v1288 = vshrl.u32 %v1287, 7
        %v1289 = vsub.s32 %v1286, %v1288
        %v1290 = vrot.slane %v1262, %v1289
        %v1291 = vcombine.high %v1269, %v1269
        %v1292 = vcombine.high %v1276, %v1276
        %v1293 = vcombine.high %v1283, %v1283
        %v1294 = vcombine.high %v1290, %v1290
        %v1295 = vlaneseq
        %v1296 = vshrl.u32 %v1295, 7
        %v1297 = vsub.s32 0, %v1296
        %v1298 = vrot.slane %v1219, %v1297
        %v1299 = vlaneseq
        %v1300 = vshrl.u32 %v1299, 7
        %v1301 = vsub.s32 0, %v1300
        %v1302 = vrot.slane %v1233, %v1301
        %v1303 = vlaneseq
        %v1304 = vshrl.u32 %v1303, 7
        %v1305 = vsub.s32 0, %v1304
        %v1306 = vrot.slane %v1241, %v1305
        %v1307 = vlaneseq
        %v1308 = vshrl.u32 %v1307, 7
        %v1309 = vsub.s32 0, %v1308
        %v1310 = vrot.slane %v1243, %v1309
        %v1311 = vlaneseq
        %v1312 = vshrl.u32 %v1311, 7
        %v1313 = vsub.s32 0, %v1312
        %v1314 = vrot.slane %v1226, %v1313
        %v1315 = vlaneseq
        %v1316 = vshrl.u32 %v1315, 7
        %v1317 = vsub.s32 0, %v1316
        %v1318 = vrot.slane %v1240, %v1317
        %v1319 = vlaneseq
        %v1320 = vshrl.u32 %v1319, 7
        %v1321 = vsub.s32 0, %v1320
        %v1322 = vrot.slane %v1242, %v1321
        %v1323 = vlaneseq
        %v1324 = vshrl.u32 %v1323, 7
        %v1325 = vsub.s32 0, %v1324
        %v1326 = vrot.slane %v1244, %v1325
        %v1335 = vlaneseq
        %v1336 = vshrl.u32 %v1335, 7
        %v1337 = vsub.s32 0, %v1336
        %v1338 = vrot.slane %v1269, %v1337
        %v1339 = vlaneseq
        %v1340 = vshrl.u32 %v1339, 7
        %v1341 = vsub.s32 0, %v1340
        %v1342 = vrot.slane %v1283, %v1341
        %v1343 = vlaneseq
        %v1344 = vshrl.u32 %v1343, 7
        %v1345 = vsub.s32 0, %v1344
        %v1346 = vrot.slane %v1291, %v1345
        %v1347 = vlaneseq
        %v1348 = vshrl.u32 %v1347, 7
        %v1349 = vsub.s32 0, %v1348
        %v1350 = vrot.slane %v1293, %v1349
        %v1351 = vlaneseq
        %v1352 = vshrl.u32 %v1351, 7
        %v1353 = vsub.s32 0, %v1352
        %v1354 = vrot.slane %v1276, %v1353
        %v1355 = vlaneseq
        %v1356 = vshrl.u32 %v1355, 7
        %v1357 = vsub.s32 0, %v1356
        %v1358 = vrot.slane %v1290, %v1357
        %v1359 = vlaneseq
        %v1360 = vshrl.u32 %v1359, 7
        %v1361 = vsub.s32 0, %v1360
        %v1362 = vrot.slane %v1292, %v1361
        %v1363 = vlaneseq
        %v1364 = vshrl.u32 %v1363, 7
        %v1365 = vsub.s32 0, %v1364
        %v1366 = vrot.slane %v1294, %v1365
        %vm1375 = vcmask 1040384
        %v1376 = vsel %vm1375, %v1161, %v1298
        %v1377 = vsel %vm1375, %v1175, %v1302
        %v1378 = vsel %vm1375, %v1183, %v1306
        %v1379 = vsel %vm1375, %v1185, %v1310
        %v1380 = vsel %vm1375, %v1168, %v1314
        %v1381 = vsel %vm1375, %v1182, %v1318
        %v1382 = vsel %vm1375, %v1184, %v1322
        %v1383 = vsel %vm1375, %v1186, %v1326
        %vm1384 = vcmask 1041408
        %v1385 = vsel %vm1384, %v1376, %v1338
        %v1386 = vsel %vm1384, %v1377, %v1342
        %v1387 = vsel %vm1384, %v1378, %v1346
        %v1388 = vsel %vm1384, %v1379, %v1350
        %v1389 = vsel %vm1384, %v1380, %v1354
        %v1390 = vsel %vm1384, %v1381, %v1358
        %v1391 = vsel %vm1384, %v1382, %v1362
        %v1392 = vsel %vm1384, %v1383, %v1366
        %1393 = vst [vmem:[%s323] sm:$0x7] %v1385
        %1394 = vst [vmem:[%s323 + $0x4] sm:$0x7] %v1386
        %1395 = vst [vmem:[%s323 + $0x8] sm:$0x7] %v1387
        %1396 = vst [vmem:[%s323 + $0xc] sm:$0x7] %v1388
        %1397 = vst [vmem:[%s323 + $0x10] sm:$0x7] %v1389
        %1398 = vst [vmem:[%s323 + $0x14] sm:$0x7] %v1390
        %1399 = vst [vmem:[%s323 + $0x18] sm:$0x7] %v1391
        %1400 = vst [vmem:[%s323 + $0x1c] sm:$0x7] %v1392
        %v1401 = vld [vmem:[%s4] sm:$0xf]
        %v1402 = vld [vmem:[%s4 + $0x4] sm:$0xf]
        %v1403 = vld [vmem:[%s4 + $0x8] sm:$0xf]
        %v1404 = vld [vmem:[%s4 + $0xc] sm:$0xf]
        %v1405 = vld [vmem:[%s4 + $0x10] sm:$0xf]
        %v1406 = vld [vmem:[%s4 + $0x14] sm:$0xf]
        %v1407 = vld [vmem:[%s4 + $0x18] sm:$0xf]
        %v1408 = vld [vmem:[%s4 + $0x1c] sm:$0xf]
        %v1409 = vld [vmem:[%s4 + $0x20] sm:$0xf]
        %v1410 = vld [vmem:[%s4 + $0x24] sm:$0xf]
        %v1411 = vld [vmem:[%s4 + $0x28] sm:$0xf]
        %v1412 = vld [vmem:[%s4 + $0x2c] sm:$0xf]
        %v1413 = vld [vmem:[%s4 + $0x30] sm:$0xf]
        %v1414 = vld [vmem:[%s4 + $0x34] sm:$0xf]
        %v1415 = vld [vmem:[%s4 + $0x38] sm:$0xf]
        %v1416 = vld [vmem:[%s4 + $0x3c] sm:$0xf]
        %v1417 = vld [vmem:[%s5] sm:$0x1]
        %v1419 = vlaneseq
        %v1420 = vshrl.u32 %v1419, 7
        %v1421 = vsub.s32 0, %v1420
        %v1422 = vrot.slane %v1417, %v1421
        %v1440 = vunpack.c.l.b16 %v1401
        %v1441 = vunpack.c.l.b16 %v1402
        %v1442 = vunpack.c.l.b16 %v1403
        %v1443 = vunpack.c.l.b16 %v1404
        %v1444 = vunpack.c.l.b16 %v1405
        %v1445 = vunpack.c.l.b16 %v1406
        %v1446 = vunpack.c.l.b16 %v1407
        %v1447 = vunpack.c.l.b16 %v1408
        %v1448 = vunpack.c.l.b16 %v1409
        %v1449 = vunpack.c.l.b16 %v1410
        %v1450 = vunpack.c.l.b16 %v1411
        %v1451 = vunpack.c.l.b16 %v1412
        %v1452 = vunpack.c.l.b16 %v1413
        %v1453 = vunpack.c.l.b16 %v1414
        %v1454 = vunpack.c.l.b16 %v1415
        %v1455 = vunpack.c.l.b16 %v1416
        %v1456 = vpack.c.b16 %v1441, %v1440
        %v1457 = vpack.c.b16 %v1443, %v1442
        %v1458 = vpack.c.b16 %v1445, %v1444
        %v1459 = vpack.c.b16 %v1447, %v1446
        %v1460 = vpack.c.b16 %v1449, %v1448
        %v1461 = vpack.c.b16 %v1451, %v1450
        %v1462 = vpack.c.b16 %v1453, %v1452
        %v1463 = vpack.c.b16 %v1455, %v1454
        %1472 = vmatprep.subr.bf16.mxu0 0
        %1473 = vmatpush1.bf16.msra.mxu0 %v1463
        %1474 = vmatprep.subr.bf16.mxu0 0
        %1475 = vmatpush1.bf16.msra.mxu0 %v1462
        %1476 = vmatprep.subr.bf16.mxu0 0
        %1477 = vmatpush1.bf16.msra.mxu0 %v1461
        %1478 = vmatprep.subr.bf16.mxu0 0
        %1479 = vmatpush1.bf16.msra.mxu0 %v1460
        %1480 = vmatprep.subr.bf16.mxu0 0
        %1481 = vmatpush1.bf16.msra.mxu0 %v1459
        %1482 = vmatprep.subr.bf16.mxu0 0
        %1483 = vmatpush1.bf16.msra.mxu0 %v1458
        %1484 = vmatprep.subr.bf16.mxu0 0
        %1485 = vmatpush1.bf16.msra.mxu0 %v1457
        %1486 = vmatprep.subr.bf16.mxu0 0
        %1487 = vmatpush1.bf16.msra.mxu0 %v1456
        %1488 = vmatprep.subr.bf16.mxu0 0
        %1489 = vmatpush2.bf16.msra.mxu0 0
        %1490 = vmatprep.subr.bf16.mxu0 0
        %1491 = vmatpush2.bf16.msra.mxu0 0
        %1492 = vmatprep.subr.bf16.mxu0 0
        %1493 = vmatpush2.bf16.msra.mxu0 0
        %1494 = vmatprep.subr.bf16.mxu0 0
        %1495 = vmatpush2.bf16.msra.mxu0 0
        %1496 = vmatprep.subr.bf16.mxu0 0
        %1497 = vmatpush2.bf16.msra.mxu0 0
        %1498 = vmatprep.subr.bf16.mxu0 0
        %1499 = vmatpush2.bf16.msra.mxu0 0
        %1500 = vmatprep.subr.bf16.mxu0 0
        %1501 = vmatpush2.bf16.msra.mxu0 0
        %1502 = vmatprep.subr.bf16.mxu0 0
        %1503 = vmatpush2.bf16.msra.mxu0 0
        %1504 = vmatprep.mubr.bf16.mxu0 0
        %1505 = vmatmul.mubr.bf16.gmra.mxu0 %v1136
        %v1506 = vpop.f32.mrf.mxu0
        %v1507 = vadd.f32 %v1422, %v1506
        %v1508 = vpop.f32.mrf.mxu0
        %v1509 = vpop.f32.mrf.mxu0
        %v1510 = vpop.f32.mrf.mxu0
        %1511 = vdwg.mxu0
        %v1512 = vtanh.pop %v1507
        %1513 = vst [vmem:[%s301] sm:$0xff] %v1512
        %s1514 = sand.u32 %s167, 1
        %s1515 = scalar_lea.sflag [#allocation4], %s1514
        %s1516 = sand.u32 %s167, 1
        %s1517 = smul.addr %s1516, 8
        %s1518 = scalar_lea.vmem [#allocation5], %s1517
        %s1519 = smul.u32 8, %s23
        %p1520 = scmp.lt.s32.totalorder %s1519, 15
        %s1521 = scalar_select %p1520, %s1519, 15
        %s1522 = smul.addr %s1521, 4
        %s1523 = scalar_lea.vmem %s7, %s1522
        // Predicated region
        $region49: #{rnn_forward.1} parent=43 // pred_check
          %p1524 = pneg %p177
        $region50: #{rnn_forward.1} parent=43 // pred_check_branch
          %1526 = sbr.rel (%p1524) target = $region52
        $region51: #{rnn_forward.1} parent=43 // pred_region
          %s1528 = ssub.s32 128, 128
          %1529 = vsyncadd %s1515, %s1528
          %s1530 = smul.addr %s23, 128
          %s1531 = scalar_lea.hbm %s6, %s1530
          %s1533 = sshll.u32 %s1518, 4
          %s1534 = int_to_ptr.vmem [resolvable:$true] %s1533
          %1536 = dma.vmem_to_hbm [thread:$0]  %s1534, 128, %s1531, %s1515
        $region52: #{rnn_forward.1} parent=43 // pred_fallthru
          _
        // Predicated region
        $region53: #{rnn_forward.1} parent=43 // pred_check
          %p1537 = pneg %p203
        $region54: #{rnn_forward.1} parent=43 // pred_check_branch
          %1539 = sbr.rel (%p1537) target = $region56
        $region55: #{rnn_forward.1} parent=43 // pred_region
          %s1540 = smul.u32 8, %s23
        $region56: #{rnn_forward.1} parent=43 // pred_fallthru
          _
      $region44: #{rnn_forward.1} parent=5 // pred_fallthru
        _
      %p1541 = scmp.le.s32.totalorder 2, %s18
      // Predicated region
      $region57: #{rnn_forward.1} parent=5 // pred_check
        %p1542 = pneg %p1541
      $region58: #{rnn_forward.1} parent=5 // pred_check_branch
        %1544 = sbr.rel (%p1542) target = $region60
      $region59: #{rnn_forward.1} parent=5 // pred_region
        %s1545 = ssub.s32 %s18, 2
        // Predicated region
        $region61: #{rnn_forward.1} parent=59 // pred_check
          %p1546 = pneg %p183
        $region62: #{rnn_forward.1} parent=59 // pred_check_branch
          %1548 = sbr.rel (%p1546) target = $region64
        $region63: #{rnn_forward.1} parent=59 // pred_region
          %s1549 = sand.u32 %s168, 1
          %s1550 = scalar_lea.sflag [#allocation4], %s1549
          %s1551 = sand.u32 %s168, 1
          %s1552 = smul.addr %s1551, 8
          %s1553 = scalar_lea.vmem [#allocation5], %s1552
          %1554 = dma.done %s1550, 128
        $region64: #{rnn_forward.1} parent=59 // pred_fallthru
          _
        // Predicated region
        $region65: #{rnn_forward.1} parent=59 // pred_check
          %p1555 = pneg %p209
        $region66: #{rnn_forward.1} parent=59 // pred_check_branch
          %1557 = sbr.rel (%p1555) target = $region68
        $region67: #{rnn_forward.1} parent=59 // pred_region
          %s1558 = smul.u32 8, %s24
          %p1559 = scmp.lt.s32.totalorder %s1558, 15
          %s1560 = scalar_select %p1559, %s1558, 15
          %s1561 = smul.addr %s1560, 4
          %s1562 = scalar_lea.vmem %s7, %s1561
        $region68: #{rnn_forward.1} parent=59 // pred_fallthru
          _
      $region60: #{rnn_forward.1} parent=5 // pred_fallthru
        _
    $region6: #{rnn_forward.1} parent=1 // loop_footer
      %s22 = sadd.s32 1, %s18
    $region7: #{rnn_forward.1} parent=1 // loop_footer_branch
      %17 = sbr.rel target = $region3
    $region8: #{rnn_forward.1} parent=1 // loop_exit
      _
    %1563 = vsyncpa [#allocation3], 1
    %s1564 = scalar_lea.sflag [#allocation3], 1
    %1565 = vsyncpa %s1564, 1
    %1566 = vsyncpa [#allocation4], 1
    %s1567 = scalar_lea.sflag [#allocation4], 1
    %1568 = vsyncpa %s1567, 1

</llo_original>
